<compile_context>
chip_gen: v5e
topology: v5e:2x2
jax: 0.10.0
libtpu: 0.0.40
codegen_flags: <defaults>
</compile_context>

<pallas_src>
import jax
import jax.numpy as jnp
import numpy as np
from jax.experimental import pallas as pl
from jax.experimental.pallas import tpu as pltpu

# ----------------------------- model dims -----------------------------------
B, N, C = 2, 3, 4          # batch, nodes, channels (channel 0 = target)
L_IN, L_OUT = 8, 4
COV = C - 1                # covariate feature size
E = 8                      # embedding_size
H = 32                     # hidden_size
NUM_LAYERS = 2
BN = B * N
BN_PAD = 8                 # sublane-aligned batch*node
T = L_IN + L_OUT - 1       # recurrent steps (t = 1 .. L_in+L_out-1)
G4 = 4 * H                 # 128 gate lanes (i|f|g|o)
HEAD_PAD = 128             # lane-dense head / output width


# ----------------------------- Pallas kernel ---------------------------------
def deepar_kernel(xg_ref, w_ref, bias_ref, out_ref):
    # hoist weight / bias / lane-constant loads out of the unrolled time loop
    whh0 = w_ref[0 * H:1 * H, :]        # [H, 4H]   bf16, layer-0 recurrent
    w1 = w_ref[1 * H:3 * H, :]          # [2H, 4H]  bf16, [wih1; whh1] stacked
    whead = w_ref[3 * H:4 * H, :]       # [H, 128]  bf16, cols 0/1 = mu/sigma
    b1 = bias_ref[0]                    # [BN_PAD, 4H]  (i/f/o cols pre-scaled)
    bhead = bias_ref[1]                 # [BN_PAD, 128]
    act_scale = bias_ref[2]             # 0.5 on i/f/o lanes, 1.0 on g lanes
    act_offset = bias_ref[3]            # 0.5 on i/f/o lanes, 0.0 on g lanes

    zeros = jnp.zeros((BN_PAD, H), jnp.float32)
    h0, c0, h1, c1 = zeros, zeros, zeros, zeros

    def lstm_step(gates, c_prev):
        # single EUP pass over the full gate vreg; sigmoid lanes recovered via
        # sigmoid(x) = 0.5*tanh(x/2) + 0.5 (inputs to i/f/o were pre-halved).
        act = jnp.tanh(gates) * act_scale + act_offset
        i = act[:, 0 * H:1 * H]
        f = act[:, 1 * H:2 * H]
        g = act[:, 2 * H:3 * H]
        o = act[:, 3 * H:4 * H]
        c_new = f * c_prev + i * g
        h_new = o * jnp.tanh(c_new)
        return h_new, c_new

    for t in range(T):
        # layer 0: input path (embed + cov + bias) precomputed host-side
        gates0 = xg_ref[t] + jnp.dot(h0.astype(jnp.bfloat16), whh0,
                                     preferred_element_type=jnp.float32)
        h0, c0 = lstm_step(gates0, c0)

        # layer 1: single K-concat matmul [h0_new | h1_prev] @ [wih1; whh1]
        hcat = jnp.concatenate([h0, h1], axis=1).astype(jnp.bfloat16)
        gates1 = jnp.dot(hcat, w1, preferred_element_type=jnp.float32) + b1
        h1, c1 = lstm_step(gates1, c1)

        # probabilistic head, only for the last L_OUT steps (lane-dense store);
        # raw mu / pre-softplus sigma stored, softplus applied host-side
        if t >= L_IN - 1:
            hid = jnp.maximum(h1, 0.0).astype(jnp.bfloat16)
            out_ref[t - (L_IN - 1)] = (
                jnp.dot(hid, whead, preferred_element_type=jnp.float32) + bhead)


def deepar_forward(z_seq, cov_seq, params):
    """z_seq: [T, BN, 1], cov_seq: [T, BN, COV] -> [B, L_OUT, N, 2]."""
    f32 = jnp.float32
    # per-gate column scaling: halve i/f/o pre-activations (tanh-only trick)
    half, one, zero = (jnp.full((H,), 0.5, f32), jnp.ones((H,), f32),
                       jnp.zeros((H,), f32))
    gate_scale = jnp.concatenate([half, half, one, half])    # [4H]
    act_offset = jnp.concatenate([half, half, zero, half])   # [4H]

    # ---- host-side fusion / padding (cheap XLA ops, off the serial chain)
    # embedding Linear(1->E) folded into the layer-0 input weights:
    #   (z @ we + be) @ wih0e = z @ (we @ wih0e) + (be @ wih0e)
    wx0 = jnp.concatenate([params["we"] @ params["wih0e"],    # z column
                           params["wih0c"]], axis=0)          # [1+COV, 4H]
    b0_eff = params["be"] @ params["wih0e"] + params["b0"]    # [1, 4H]

    x_seq = jnp.concatenate([z_seq, cov_seq], axis=-1)        # [T, BN, 1+COV]
    xg = (jnp.einsum("tbk,kg->tbg", x_seq, wx0) + b0_eff) * gate_scale
    xg = jnp.pad(xg, ((0, 0), (0, BN_PAD - BN), (0, 0)))      # [T, BN_PAD, 4H]

    # bf16 weight slab [4H, 4H] = [whh0; wih1; whh1; whead_pad]
    whh0_s = (params["whh0"] * gate_scale).astype(jnp.bfloat16)
    w1_s = (jnp.concatenate([params["wih1"], params["whh1"]], axis=0)
            * gate_scale).astype(jnp.bfloat16)
    whead_pad = jnp.zeros((H, HEAD_PAD), f32).at[:, :2].set(
        params["whead"]).astype(jnp.bfloat16)
    w_slab = jnp.concatenate([whh0_s, w1_s, whead_pad], axis=0)   # [128, 128]

    # f32 bias / lane-constant slab [4, BN_PAD, 128]
    b1_s = jnp.broadcast_to(params["b1"] * gate_scale, (BN_PAD, G4))
    bhead_pad = jnp.zeros((BN_PAD, HEAD_PAD), f32).at[:, :2].set(
        jnp.broadcast_to(params["bhead"], (BN_PAD, 2)))
    bias_slab = jnp.stack([b1_s, bhead_pad,
                           jnp.broadcast_to(gate_scale, (BN_PAD, G4)),
                           jnp.broadcast_to(act_offset, (BN_PAD, G4))])

    full = lambda shape: pl.BlockSpec(shape, lambda i, _s=shape: tuple(0 for _ in _s))
    out = pl.pallas_call(
        deepar_kernel,
        out_shape=jax.ShapeDtypeStruct((L_OUT, BN_PAD, HEAD_PAD), jnp.float32),
        grid_spec=pltpu.PrefetchScalarGridSpec(
            num_scalar_prefetch=0,
            grid=(1,),
            in_specs=[full((T, BN_PAD, G4)),
                      full((G4, G4)),
                      full((4, BN_PAD, HEAD_PAD))],
            out_specs=full((L_OUT, BN_PAD, HEAD_PAD)),
        ),
        compiler_params=pltpu.CompilerParams(dimension_semantics=("arbitrary",)),
    )(xg, w_slab, bias_slab)

    # drop padding, apply softplus to the sigma lane host-side (24 elements)
    tail = out[:, :BN, :2].reshape(L_OUT, B, N, 2)
    mu, sigma = tail[..., 0], jax.nn.softplus(tail[..., 1])
    return jnp.transpose(jnp.stack([mu, sigma], axis=-1), (1, 0, 2, 3))


# ----------------------------- pure-JAX reference ----------------------------
def deepar_reference(z_seq, cov_seq, p):
    h = jnp.zeros((NUM_LAYERS, BN, H), jnp.float32)
    c = jnp.zeros((NUM_LAYERS, BN, H), jnp.float32)
    outs = []
    for s in range(T):
        z, cov = z_seq[s], cov_seq[s]
        embed = z * p["we"] + p["be"]
        g0 = embed @ p["wih0e"] + cov @ p["wih0c"] + h[0] @ p["whh0"] + p["b0"]
        i0, f0 = jax.nn.sigmoid(g0[:, :H]), jax.nn.sigmoid(g0[:, H:2 * H])
        gg0, o0 = jnp.tanh(g0[:, 2 * H:3 * H]), jax.nn.sigmoid(g0[:, 3 * H:])
        c0 = f0 * c[0] + i0 * gg0
        h0 = o0 * jnp.tanh(c0)
        g1 = h0 @ p["wih1"] + h[1] @ p["whh1"] + p["b1"]
        i1, f1 = jax.nn.sigmoid(g1[:, :H]), jax.nn.sigmoid(g1[:, H:2 * H])
        gg1, o1 = jnp.tanh(g1[:, 2 * H:3 * H]), jax.nn.sigmoid(g1[:, 3 * H:])
        c1 = f1 * c[1] + i1 * gg1
        h1 = o1 * jnp.tanh(c1)
        h = jnp.stack([h0, h1]); c = jnp.stack([c0, c1])
        head = jnp.maximum(h1, 0.0) @ p["whead"] + p["bhead"]
        outs.append(jnp.stack([head[:, 0], jax.nn.softplus(head[:, 1])], -1))
    out_seq = jnp.stack(outs)
    tail = out_seq[L_IN - 1:].reshape(L_OUT, B, N, 2)
    return jnp.transpose(tail, (1, 0, 2, 3))


# ----------------------------- main -------------------------------------------
if __name__ == "__main__":
    key = jax.random.PRNGKey(0)
    keys = jax.random.split(key, 16)

    history_data = jax.random.normal(keys[0], (B, L_IN, N, C), jnp.float32)
    future_data = jax.random.normal(keys[1], (B, L_OUT, N, C), jnp.float32)

    sc = 0.2
    params = {
        "we":    sc * jax.random.normal(keys[2], (1, E), jnp.float32),
        "be":    sc * jax.random.normal(keys[3], (1, E), jnp.float32),
        "wih0e": sc * jax.random.normal(keys[4], (E, 4 * H), jnp.float32),
        "wih0c": sc * jax.random.normal(keys[5], (COV, 4 * H), jnp.float32),
        "whh0":  sc * jax.random.normal(keys[6], (H, 4 * H), jnp.float32),
        "b0":    sc * jax.random.normal(keys[7], (1, 4 * H), jnp.float32),
        "wih1":  sc * jax.random.normal(keys[8], (H, 4 * H), jnp.float32),
        "whh1":  sc * jax.random.normal(keys[9], (H, 4 * H), jnp.float32),
        "b1":    sc * jax.random.normal(keys[10], (1, 4 * H), jnp.float32),
        "whead": sc * jax.random.normal(keys[11], (H, 2), jnp.float32),
        "bhead": sc * jax.random.normal(keys[12], (1, 2), jnp.float32),
    }

    # build time-major recurrent inputs (matches the PyTorch loop, train=True)
    input_feat_full = jnp.concatenate(
        [history_data[:, :, :, 0:1], future_data[:, :, :, 0:1]], axis=1)   # [B, L, N, 1]
    covar_feat_full = jnp.concatenate(
        [history_data[:, :, :, 1:], future_data[:, :, :, 1:]], axis=1)     # [B, L, N, COV]

    # step s corresponds to t = s+1: target at t-1, covariates at t
    z_seq = jnp.transpose(input_feat_full[:, :T, :, :], (1, 0, 2, 3)).reshape(T, BN, 1)
    cov_seq = jnp.transpose(covar_feat_full[:, 1:T + 1, :, :], (1, 0, 2, 3)).reshape(T, BN, COV)

    out = deepar_forward(z_seq, cov_seq, params)
    out = jax.block_until_ready(out)

    ref = deepar_reference(z_seq, cov_seq, params)
    assert out.shape == (B, L_OUT, N, 2), out.shape
    # tolerance accommodates bf16 MXU operands over the 11-step recurrence
    np.testing.assert_allclose(np.asarray(out), np.asarray(ref),
                               rtol=2e-2, atol=1e-2)
    print("KERNEL_OK")
</pallas_src>

<mosaic_0001>
module attributes {stable_mosaic.version = 11 : i64} {
  func.func @deepar_kernel(%arg0: i32, %arg1: memref<11x8x128xf32, #tpu.memory_space<vmem>>, %arg2: memref<128x128xbf16, #tpu.memory_space<vmem>>, %arg3: memref<4x8x128xf32, #tpu.memory_space<vmem>>, %arg4: memref<4x8x128xf32, #tpu.memory_space<vmem>>) attributes {dimension_semantics = [#tpu.dimension_semantics<arbitrary>], iteration_bounds = array<i64: 1>, scalar_prefetch = 0 : i64, scratch_operands = 0 : i64, tpu.core_type = #tpu.core_type<tc>, window_params = [{pipeline_mode = #tpu.pipeline_mode<synchronous>, transform_indices = @transform_0, window_bounds = array<i64: 11, 8, 128>}, {pipeline_mode = #tpu.pipeline_mode<synchronous>, transform_indices = @transform_1, window_bounds = array<i64: 128, 128>}, {pipeline_mode = #tpu.pipeline_mode<synchronous>, transform_indices = @transform_2, window_bounds = array<i64: 4, 8, 128>}, {pipeline_mode = #tpu.pipeline_mode<synchronous>, transform_indices = @transform_3, window_bounds = array<i64: 4, 8, 128>}]} {
    %c0 = arith.constant 0 : index
    %c0_0 = arith.constant 0 : index
    %0 = vector.load %arg2[%c0, %c0_0] : memref<128x128xbf16, #tpu.memory_space<vmem>>, vector<32x128xbf16>
    %c32 = arith.constant 32 : index
    %c0_1 = arith.constant 0 : index
    %1 = vector.load %arg2[%c32, %c0_1] : memref<128x128xbf16, #tpu.memory_space<vmem>>, vector<64x128xbf16>
    %c96 = arith.constant 96 : index
    %c0_2 = arith.constant 0 : index
    %2 = vector.load %arg2[%c96, %c0_2] : memref<128x128xbf16, #tpu.memory_space<vmem>>, vector<32x128xbf16>
    %c0_3 = arith.constant 0 : index
    %c0_4 = arith.constant 0 : index
    %c0_5 = arith.constant 0 : index
    %3 = vector.load %arg3[%c0_3, %c0_4, %c0_5] : memref<4x8x128xf32, #tpu.memory_space<vmem>>, vector<1x8x128xf32>
    %4 = vector.shape_cast %3 : vector<1x8x128xf32> to vector<8x128xf32>
    %c1 = arith.constant 1 : index
    %c0_6 = arith.constant 0 : index
    %c0_7 = arith.constant 0 : index
    %5 = vector.load %arg3[%c1, %c0_6, %c0_7] : memref<4x8x128xf32, #tpu.memory_space<vmem>>, vector<1x8x128xf32>
    %6 = vector.shape_cast %5 : vector<1x8x128xf32> to vector<8x128xf32>
    %c2 = arith.constant 2 : index
    %c0_8 = arith.constant 0 : index
    %c0_9 = arith.constant 0 : index
    %7 = vector.load %arg3[%c2, %c0_8, %c0_9] : memref<4x8x128xf32, #tpu.memory_space<vmem>>, vector<1x8x128xf32>
    %8 = vector.shape_cast %7 : vector<1x8x128xf32> to vector<8x128xf32>
    %c3 = arith.constant 3 : index
    %c0_10 = arith.constant 0 : index
    %c0_11 = arith.constant 0 : index
    %9 = vector.load %arg3[%c3, %c0_10, %c0_11] : memref<4x8x128xf32, #tpu.memory_space<vmem>>, vector<1x8x128xf32>
    %10 = vector.shape_cast %9 : vector<1x8x128xf32> to vector<8x128xf32>
    %cst = arith.constant 0.000000e+00 : f32
    %11 = vector.broadcast %cst : f32 to vector<8x32xf32>
    %c0_12 = arith.constant 0 : index
    %c0_13 = arith.constant 0 : index
    %c0_14 = arith.constant 0 : index
    %12 = vector.load %arg1[%c0_12, %c0_13, %c0_14] : memref<11x8x128xf32, #tpu.memory_space<vmem>>, vector<1x8x128xf32>
    %13 = vector.shape_cast %12 : vector<1x8x128xf32> to vector<8x128xf32>
    %14 = arith.truncf %11 : vector<8x32xf32> to vector<8x32xbf16>
    %cst_15 = arith.constant dense<0.000000e+00> : vector<8x128xf32>
    %15 = tpu.matmul %14, %0, %cst_15 {dimension_numbers = #tpu.dot_dimension_numbers<[1], [0], [0], [1], [0, 0, 1, 1], [], []>} : vector<8x32xbf16>, vector<32x128xbf16>, vector<8x128xf32> -> vector<8x128xf32>
    %16 = arith.addf %13, %15 : vector<8x128xf32>
    %17 = math.tanh %16 : vector<8x128xf32>
    %18 = arith.mulf %17, %8 : vector<8x128xf32>
    %19 = arith.addf %18, %10 : vector<8x128xf32>
    %20 = vector.extract_strided_slice %19 {offsets = [0, 0], sizes = [8, 32], strides = [1, 1]} : vector<8x128xf32> to vector<8x32xf32>
    %21 = vector.extract_strided_slice %19 {offsets = [0, 32], sizes = [8, 32], strides = [1, 1]} : vector<8x128xf32> to vector<8x32xf32>
    %22 = vector.extract_strided_slice %19 {offsets = [0, 64], sizes = [8, 32], strides = [1, 1]} : vector<8x128xf32> to vector<8x32xf32>
    %23 = vector.extract_strided_slice %19 {offsets = [0, 96], sizes = [8, 32], strides = [1, 1]} : vector<8x128xf32> to vector<8x32xf32>
    %24 = arith.mulf %21, %11 : vector<8x32xf32>
    %25 = arith.mulf %20, %22 : vector<8x32xf32>
    %26 = arith.addf %24, %25 : vector<8x32xf32>
    %27 = math.tanh %26 : vector<8x32xf32>
    %28 = arith.mulf %23, %27 : vector<8x32xf32>
    %29 = tpu.concatenate %28, %11 in 1 : vector<8x32xf32>, vector<8x32xf32> -> vector<8x64xf32>
    %30 = arith.truncf %29 : vector<8x64xf32> to vector<8x64xbf16>
    %cst_16 = arith.constant dense<0.000000e+00> : vector<8x128xf32>
    %31 = tpu.matmul %30, %1, %cst_16 {dimension_numbers = #tpu.dot_dimension_numbers<[1], [0], [0], [1], [0, 0, 1, 1], [], []>} : vector<8x64xbf16>, vector<64x128xbf16>, vector<8x128xf32> -> vector<8x128xf32>
    %32 = arith.addf %31, %4 : vector<8x128xf32>
    %33 = math.tanh %32 : vector<8x128xf32>
    %34 = arith.mulf %33, %8 : vector<8x128xf32>
    %35 = arith.addf %34, %10 : vector<8x128xf32>
    %36 = vector.extract_strided_slice %35 {offsets = [0, 0], sizes = [8, 32], strides = [1, 1]} : vector<8x128xf32> to vector<8x32xf32>
    %37 = vector.extract_strided_slice %35 {offsets = [0, 32], sizes = [8, 32], strides = [1, 1]} : vector<8x128xf32> to vector<8x32xf32>
    %38 = vector.extract_strided_slice %35 {offsets = [0, 64], sizes = [8, 32], strides = [1, 1]} : vector<8x128xf32> to vector<8x32xf32>
    %39 = vector.extract_strided_slice %35 {offsets = [0, 96], sizes = [8, 32], strides = [1, 1]} : vector<8x128xf32> to vector<8x32xf32>
    %40 = arith.mulf %37, %11 : vector<8x32xf32>
    %41 = arith.mulf %36, %38 : vector<8x32xf32>
    %42 = arith.addf %40, %41 : vector<8x32xf32>
    %43 = math.tanh %42 : vector<8x32xf32>
    %44 = arith.mulf %39, %43 : vector<8x32xf32>
    %c1_17 = arith.constant 1 : index
    %c0_18 = arith.constant 0 : index
    %c0_19 = arith.constant 0 : index
    %45 = vector.load %arg1[%c1_17, %c0_18, %c0_19] : memref<11x8x128xf32, #tpu.memory_space<vmem>>, vector<1x8x128xf32>
    %46 = vector.shape_cast %45 : vector<1x8x128xf32> to vector<8x128xf32>
    %47 = arith.truncf %28 : vector<8x32xf32> to vector<8x32xbf16>
    %cst_20 = arith.constant dense<0.000000e+00> : vector<8x128xf32>
    %48 = tpu.matmul %47, %0, %cst_20 {dimension_numbers = #tpu.dot_dimension_numbers<[1], [0], [0], [1], [0, 0, 1, 1], [], []>} : vector<8x32xbf16>, vector<32x128xbf16>, vector<8x128xf32> -> vector<8x128xf32>
    %49 = arith.addf %46, %48 : vector<8x128xf32>
    %50 = math.tanh %49 : vector<8x128xf32>
    %51 = arith.mulf %50, %8 : vector<8x128xf32>
    %52 = arith.addf %51, %10 : vector<8x128xf32>
    %53 = vector.extract_strided_slice %52 {offsets = [0, 0], sizes = [8, 32], strides = [1, 1]} : vector<8x128xf32> to vector<8x32xf32>
    %54 = vector.extract_strided_slice %52 {offsets = [0, 32], sizes = [8, 32], strides = [1, 1]} : vector<8x128xf32> to vector<8x32xf32>
    %55 = vector.extract_strided_slice %52 {offsets = [0, 64], sizes = [8, 32], strides = [1, 1]} : vector<8x128xf32> to vector<8x32xf32>
    %56 = vector.extract_strided_slice %52 {offsets = [0, 96], sizes = [8, 32], strides = [1, 1]} : vector<8x128xf32> to vector<8x32xf32>
    %57 = arith.mulf %54, %26 : vector<8x32xf32>
    %58 = arith.mulf %53, %55 : vector<8x32xf32>
    %59 = arith.addf %57, %58 : vector<8x32xf32>
    %60 = math.tanh %59 : vector<8x32xf32>
    %61 = arith.mulf %56, %60 : vector<8x32xf32>
    %62 = tpu.concatenate %61, %44 in 1 : vector<8x32xf32>, vector<8x32xf32> -> vector<8x64xf32>
    %63 = arith.truncf %62 : vector<8x64xf32> to vector<8x64xbf16>
    %cst_21 = arith.constant dense<0.000000e+00> : vector<8x128xf32>
    %64 = tpu.matmul %63, %1, %cst_21 {dimension_numbers = #tpu.dot_dimension_numbers<[1], [0], [0], [1], [0, 0, 1, 1], [], []>} : vector<8x64xbf16>, vector<64x128xbf16>, vector<8x128xf32> -> vector<8x128xf32>
    %65 = arith.addf %64, %4 : vector<8x128xf32>
    %66 = math.tanh %65 : vector<8x128xf32>
    %67 = arith.mulf %66, %8 : vector<8x128xf32>
    %68 = arith.addf %67, %10 : vector<8x128xf32>
    %69 = vector.extract_strided_slice %68 {offsets = [0, 0], sizes = [8, 32], strides = [1, 1]} : vector<8x128xf32> to vector<8x32xf32>
    %70 = vector.extract_strided_slice %68 {offsets = [0, 32], sizes = [8, 32], strides = [1, 1]} : vector<8x128xf32> to vector<8x32xf32>
    %71 = vector.extract_strided_slice %68 {offsets = [0, 64], sizes = [8, 32], strides = [1, 1]} : vector<8x128xf32> to vector<8x32xf32>
    %72 = vector.extract_strided_slice %68 {offsets = [0, 96], sizes = [8, 32], strides = [1, 1]} : vector<8x128xf32> to vector<8x32xf32>
    %73 = arith.mulf %70, %42 : vector<8x32xf32>
    %74 = arith.mulf %69, %71 : vector<8x32xf32>
    %75 = arith.addf %73, %74 : vector<8x32xf32>
    %76 = math.tanh %75 : vector<8x32xf32>
    %77 = arith.mulf %72, %76 : vector<8x32xf32>
    %c2_22 = arith.constant 2 : index
    %c0_23 = arith.constant 0 : index
    %c0_24 = arith.constant 0 : index
    %78 = vector.load %arg1[%c2_22, %c0_23, %c0_24] : memref<11x8x128xf32, #tpu.memory_space<vmem>>, vector<1x8x128xf32>
    %79 = vector.shape_cast %78 : vector<1x8x128xf32> to vector<8x128xf32>
    %80 = arith.truncf %61 : vector<8x32xf32> to vector<8x32xbf16>
    %cst_25 = arith.constant dense<0.000000e+00> : vector<8x128xf32>
    %81 = tpu.matmul %80, %0, %cst_25 {dimension_numbers = #tpu.dot_dimension_numbers<[1], [0], [0], [1], [0, 0, 1, 1], [], []>} : vector<8x32xbf16>, vector<32x128xbf16>, vector<8x128xf32> -> vector<8x128xf32>
    %82 = arith.addf %79, %81 : vector<8x128xf32>
    %83 = math.tanh %82 : vector<8x128xf32>
    %84 = arith.mulf %83, %8 : vector<8x128xf32>
    %85 = arith.addf %84, %10 : vector<8x128xf32>
    %86 = vector.extract_strided_slice %85 {offsets = [0, 0], sizes = [8, 32], strides = [1, 1]} : vector<8x128xf32> to vector<8x32xf32>
    %87 = vector.extract_strided_slice %85 {offsets = [0, 32], sizes = [8, 32], strides = [1, 1]} : vector<8x128xf32> to vector<8x32xf32>
    %88 = vector.extract_strided_slice %85 {offsets = [0, 64], sizes = [8, 32], strides = [1, 1]} : vector<8x128xf32> to vector<8x32xf32>
    %89 = vector.extract_strided_slice %85 {offsets = [0, 96], sizes = [8, 32], strides = [1, 1]} : vector<8x128xf32> to vector<8x32xf32>
    %90 = arith.mulf %87, %59 : vector<8x32xf32>
    %91 = arith.mulf %86, %88 : vector<8x32xf32>
    %92 = arith.addf %90, %91 : vector<8x32xf32>
    %93 = math.tanh %92 : vector<8x32xf32>
    %94 = arith.mulf %89, %93 : vector<8x32xf32>
    %95 = tpu.concatenate %94, %77 in 1 : vector<8x32xf32>, vector<8x32xf32> -> vector<8x64xf32>
    %96 = arith.truncf %95 : vector<8x64xf32> to vector<8x64xbf16>
    %cst_26 = arith.constant dense<0.000000e+00> : vector<8x128xf32>
    %97 = tpu.matmul %96, %1, %cst_26 {dimension_numbers = #tpu.dot_dimension_numbers<[1], [0], [0], [1], [0, 0, 1, 1], [], []>} : vector<8x64xbf16>, vector<64x128xbf16>, vector<8x128xf32> -> vector<8x128xf32>
    %98 = arith.addf %97, %4 : vector<8x128xf32>
    %99 = math.tanh %98 : vector<8x128xf32>
    %100 = arith.mulf %99, %8 : vector<8x128xf32>
    %101 = arith.addf %100, %10 : vector<8x128xf32>
    %102 = vector.extract_strided_slice %101 {offsets = [0, 0], sizes = [8, 32], strides = [1, 1]} : vector<8x128xf32> to vector<8x32xf32>
    %103 = vector.extract_strided_slice %101 {offsets = [0, 32], sizes = [8, 32], strides = [1, 1]} : vector<8x128xf32> to vector<8x32xf32>
    %104 = vector.extract_strided_slice %101 {offsets = [0, 64], sizes = [8, 32], strides = [1, 1]} : vector<8x128xf32> to vector<8x32xf32>
    %105 = vector.extract_strided_slice %101 {offsets = [0, 96], sizes = [8, 32], strides = [1, 1]} : vector<8x128xf32> to vector<8x32xf32>
    %106 = arith.mulf %103, %75 : vector<8x32xf32>
    %107 = arith.mulf %102, %104 : vector<8x32xf32>
    %108 = arith.addf %106, %107 : vector<8x32xf32>
    %109 = math.tanh %108 : vector<8x32xf32>
    %110 = arith.mulf %105, %109 : vector<8x32xf32>
    %c3_27 = arith.constant 3 : index
    %c0_28 = arith.constant 0 : index
    %c0_29 = arith.constant 0 : index
    %111 = vector.load %arg1[%c3_27, %c0_28, %c0_29] : memref<11x8x128xf32, #tpu.memory_space<vmem>>, vector<1x8x128xf32>
    %112 = vector.shape_cast %111 : vector<1x8x128xf32> to vector<8x128xf32>
    %113 = arith.truncf %94 : vector<8x32xf32> to vector<8x32xbf16>
    %cst_30 = arith.constant dense<0.000000e+00> : vector<8x128xf32>
    %114 = tpu.matmul %113, %0, %cst_30 {dimension_numbers = #tpu.dot_dimension_numbers<[1], [0], [0], [1], [0, 0, 1, 1], [], []>} : vector<8x32xbf16>, vector<32x128xbf16>, vector<8x128xf32> -> vector<8x128xf32>
    %115 = arith.addf %112, %114 : vector<8x128xf32>
    %116 = math.tanh %115 : vector<8x128xf32>
    %117 = arith.mulf %116, %8 : vector<8x128xf32>
    %118 = arith.addf %117, %10 : vector<8x128xf32>
    %119 = vector.extract_strided_slice %118 {offsets = [0, 0], sizes = [8, 32], strides = [1, 1]} : vector<8x128xf32> to vector<8x32xf32>
    %120 = vector.extract_strided_slice %118 {offsets = [0, 32], sizes = [8, 32], strides = [1, 1]} : vector<8x128xf32> to vector<8x32xf32>
    %121 = vector.extract_strided_slice %118 {offsets = [0, 64], sizes = [8, 32], strides = [1, 1]} : vector<8x128xf32> to vector<8x32xf32>
    %122 = vector.extract_strided_slice %118 {offsets = [0, 96], sizes = [8, 32], strides = [1, 1]} : vector<8x128xf32> to vector<8x32xf32>
    %123 = arith.mulf %120, %92 : vector<8x32xf32>
    %124 = arith.mulf %119, %121 : vector<8x32xf32>
    %125 = arith.addf %123, %124 : vector<8x32xf32>
    %126 = math.tanh %125 : vector<8x32xf32>
    %127 = arith.mulf %122, %126 : vector<8x32xf32>
    %128 = tpu.concatenate %127, %110 in 1 : vector<8x32xf32>, vector<8x32xf32> -> vector<8x64xf32>
    %129 = arith.truncf %128 : vector<8x64xf32> to vector<8x64xbf16>
    %cst_31 = arith.constant dense<0.000000e+00> : vector<8x128xf32>
    %130 = tpu.matmul %129, %1, %cst_31 {dimension_numbers = #tpu.dot_dimension_numbers<[1], [0], [0], [1], [0, 0, 1, 1], [], []>} : vector<8x64xbf16>, vector<64x128xbf16>, vector<8x128xf32> -> vector<8x128xf32>
    %131 = arith.addf %130, %4 : vector<8x128xf32>
    %132 = math.tanh %131 : vector<8x128xf32>
    %133 = arith.mulf %132, %8 : vector<8x128xf32>
    %134 = arith.addf %133, %10 : vector<8x128xf32>
    %135 = vector.extract_strided_slice %134 {offsets = [0, 0], sizes = [8, 32], strides = [1, 1]} : vector<8x128xf32> to vector<8x32xf32>
    %136 = vector.extract_strided_slice %134 {offsets = [0, 32], sizes = [8, 32], strides = [1, 1]} : vector<8x128xf32> to vector<8x32xf32>
    %137 = vector.extract_strided_slice %134 {offsets = [0, 64], sizes = [8, 32], strides = [1, 1]} : vector<8x128xf32> to vector<8x32xf32>
    %138 = vector.extract_strided_slice %134 {offsets = [0, 96], sizes = [8, 32], strides = [1, 1]} : vector<8x128xf32> to vector<8x32xf32>
    %139 = arith.mulf %136, %108 : vector<8x32xf32>
    %140 = arith.mulf %135, %137 : vector<8x32xf32>
    %141 = arith.addf %139, %140 : vector<8x32xf32>
    %142 = math.tanh %141 : vector<8x32xf32>
    %143 = arith.mulf %138, %142 : vector<8x32xf32>
    %c4 = arith.constant 4 : index
    %c0_32 = arith.constant 0 : index
    %c0_33 = arith.constant 0 : index
    %144 = vector.load %arg1[%c4, %c0_32, %c0_33] : memref<11x8x128xf32, #tpu.memory_space<vmem>>, vector<1x8x128xf32>
    %145 = vector.shape_cast %144 : vector<1x8x128xf32> to vector<8x128xf32>
    %146 = arith.truncf %127 : vector<8x32xf32> to vector<8x32xbf16>
    %cst_34 = arith.constant dense<0.000000e+00> : vector<8x128xf32>
    %147 = tpu.matmul %146, %0, %cst_34 {dimension_numbers = #tpu.dot_dimension_numbers<[1], [0], [0], [1], [0, 0, 1, 1], [], []>} : vector<8x32xbf16>, vector<32x128xbf16>, vector<8x128xf32> -> vector<8x128xf32>
    %148 = arith.addf %145, %147 : vector<8x128xf32>
    %149 = math.tanh %148 : vector<8x128xf32>
    %150 = arith.mulf %149, %8 : vector<8x128xf32>
    %151 = arith.addf %150, %10 : vector<8x128xf32>
    %152 = vector.extract_strided_slice %151 {offsets = [0, 0], sizes = [8, 32], strides = [1, 1]} : vector<8x128xf32> to vector<8x32xf32>
    %153 = vector.extract_strided_slice %151 {offsets = [0, 32], sizes = [8, 32], strides = [1, 1]} : vector<8x128xf32> to vector<8x32xf32>
    %154 = vector.extract_strided_slice %151 {offsets = [0, 64], sizes = [8, 32], strides = [1, 1]} : vector<8x128xf32> to vector<8x32xf32>
    %155 = vector.extract_strided_slice %151 {offsets = [0, 96], sizes = [8, 32], strides = [1, 1]} : vector<8x128xf32> to vector<8x32xf32>
    %156 = arith.mulf %153, %125 : vector<8x32xf32>
    %157 = arith.mulf %152, %154 : vector<8x32xf32>
    %158 = arith.addf %156, %157 : vector<8x32xf32>
    %159 = math.tanh %158 : vector<8x32xf32>
    %160 = arith.mulf %155, %159 : vector<8x32xf32>
    %161 = tpu.concatenate %160, %143 in 1 : vector<8x32xf32>, vector<8x32xf32> -> vector<8x64xf32>
    %162 = arith.truncf %161 : vector<8x64xf32> to vector<8x64xbf16>
    %cst_35 = arith.constant dense<0.000000e+00> : vector<8x128xf32>
    %163 = tpu.matmul %162, %1, %cst_35 {dimension_numbers = #tpu.dot_dimension_numbers<[1], [0], [0], [1], [0, 0, 1, 1], [], []>} : vector<8x64xbf16>, vector<64x128xbf16>, vector<8x128xf32> -> vector<8x128xf32>
    %164 = arith.addf %163, %4 : vector<8x128xf32>
    %165 = math.tanh %164 : vector<8x128xf32>
    %166 = arith.mulf %165, %8 : vector<8x128xf32>
    %167 = arith.addf %166, %10 : vector<8x128xf32>
    %168 = vector.extract_strided_slice %167 {offsets = [0, 0], sizes = [8, 32], strides = [1, 1]} : vector<8x128xf32> to vector<8x32xf32>
    %169 = vector.extract_strided_slice %167 {offsets = [0, 32], sizes = [8, 32], strides = [1, 1]} : vector<8x128xf32> to vector<8x32xf32>
    %170 = vector.extract_strided_slice %167 {offsets = [0, 64], sizes = [8, 32], strides = [1, 1]} : vector<8x128xf32> to vector<8x32xf32>
    %171 = vector.extract_strided_slice %167 {offsets = [0, 96], sizes = [8, 32], strides = [1, 1]} : vector<8x128xf32> to vector<8x32xf32>
    %172 = arith.mulf %169, %141 : vector<8x32xf32>
    %173 = arith.mulf %168, %170 : vector<8x32xf32>
    %174 = arith.addf %172, %173 : vector<8x32xf32>
    %175 = math.tanh %174 : vector<8x32xf32>
    %176 = arith.mulf %171, %175 : vector<8x32xf32>
    %c5 = arith.constant 5 : index
    %c0_36 = arith.constant 0 : index
    %c0_37 = arith.constant 0 : index
    %177 = vector.load %arg1[%c5, %c0_36, %c0_37] : memref<11x8x128xf32, #tpu.memory_space<vmem>>, vector<1x8x128xf32>
    %178 = vector.shape_cast %177 : vector<1x8x128xf32> to vector<8x128xf32>
    %179 = arith.truncf %160 : vector<8x32xf32> to vector<8x32xbf16>
    %cst_38 = arith.constant dense<0.000000e+00> : vector<8x128xf32>
    %180 = tpu.matmul %179, %0, %cst_38 {dimension_numbers = #tpu.dot_dimension_numbers<[1], [0], [0], [1], [0, 0, 1, 1], [], []>} : vector<8x32xbf16>, vector<32x128xbf16>, vector<8x128xf32> -> vector<8x128xf32>
    %181 = arith.addf %178, %180 : vector<8x128xf32>
    %182 = math.tanh %181 : vector<8x128xf32>
    %183 = arith.mulf %182, %8 : vector<8x128xf32>
    %184 = arith.addf %183, %10 : vector<8x128xf32>
    %185 = vector.extract_strided_slice %184 {offsets = [0, 0], sizes = [8, 32], strides = [1, 1]} : vector<8x128xf32> to vector<8x32xf32>
    %186 = vector.extract_strided_slice %184 {offsets = [0, 32], sizes = [8, 32], strides = [1, 1]} : vector<8x128xf32> to vector<8x32xf32>
    %187 = vector.extract_strided_slice %184 {offsets = [0, 64], sizes = [8, 32], strides = [1, 1]} : vector<8x128xf32> to vector<8x32xf32>
    %188 = vector.extract_strided_slice %184 {offsets = [0, 96], sizes = [8, 32], strides = [1, 1]} : vector<8x128xf32> to vector<8x32xf32>
    %189 = arith.mulf %186, %158 : vector<8x32xf32>
    %190 = arith.mulf %185, %187 : vector<8x32xf32>
    %191 = arith.addf %189, %190 : vector<8x32xf32>
    %192 = math.tanh %191 : vector<8x32xf32>
    %193 = arith.mulf %188, %192 : vector<8x32xf32>
    %194 = tpu.concatenate %193, %176 in 1 : vector<8x32xf32>, vector<8x32xf32> -> vector<8x64xf32>
    %195 = arith.truncf %194 : vector<8x64xf32> to vector<8x64xbf16>
    %cst_39 = arith.constant dense<0.000000e+00> : vector<8x128xf32>
    %196 = tpu.matmul %195, %1, %cst_39 {dimension_numbers = #tpu.dot_dimension_numbers<[1], [0], [0], [1], [0, 0, 1, 1], [], []>} : vector<8x64xbf16>, vector<64x128xbf16>, vector<8x128xf32> -> vector<8x128xf32>
    %197 = arith.addf %196, %4 : vector<8x128xf32>
    %198 = math.tanh %197 : vector<8x128xf32>
    %199 = arith.mulf %198, %8 : vector<8x128xf32>
    %200 = arith.addf %199, %10 : vector<8x128xf32>
    %201 = vector.extract_strided_slice %200 {offsets = [0, 0], sizes = [8, 32], strides = [1, 1]} : vector<8x128xf32> to vector<8x32xf32>
    %202 = vector.extract_strided_slice %200 {offsets = [0, 32], sizes = [8, 32], strides = [1, 1]} : vector<8x128xf32> to vector<8x32xf32>
    %203 = vector.extract_strided_slice %200 {offsets = [0, 64], sizes = [8, 32], strides = [1, 1]} : vector<8x128xf32> to vector<8x32xf32>
    %204 = vector.extract_strided_slice %200 {offsets = [0, 96], sizes = [8, 32], strides = [1, 1]} : vector<8x128xf32> to vector<8x32xf32>
    %205 = arith.mulf %202, %174 : vector<8x32xf32>
    %206 = arith.mulf %201, %203 : vector<8x32xf32>
    %207 = arith.addf %205, %206 : vector<8x32xf32>
    %208 = math.tanh %207 : vector<8x32xf32>
    %209 = arith.mulf %204, %208 : vector<8x32xf32>
    %c6 = arith.constant 6 : index
    %c0_40 = arith.constant 0 : index
    %c0_41 = arith.constant 0 : index
    %210 = vector.load %arg1[%c6, %c0_40, %c0_41] : memref<11x8x128xf32, #tpu.memory_space<vmem>>, vector<1x8x128xf32>
    %211 = vector.shape_cast %210 : vector<1x8x128xf32> to vector<8x128xf32>
    %212 = arith.truncf %193 : vector<8x32xf32> to vector<8x32xbf16>
    %cst_42 = arith.constant dense<0.000000e+00> : vector<8x128xf32>
    %213 = tpu.matmul %212, %0, %cst_42 {dimension_numbers = #tpu.dot_dimension_numbers<[1], [0], [0], [1], [0, 0, 1, 1], [], []>} : vector<8x32xbf16>, vector<32x128xbf16>, vector<8x128xf32> -> vector<8x128xf32>
    %214 = arith.addf %211, %213 : vector<8x128xf32>
    %215 = math.tanh %214 : vector<8x128xf32>
    %216 = arith.mulf %215, %8 : vector<8x128xf32>
    %217 = arith.addf %216, %10 : vector<8x128xf32>
    %218 = vector.extract_strided_slice %217 {offsets = [0, 0], sizes = [8, 32], strides = [1, 1]} : vector<8x128xf32> to vector<8x32xf32>
    %219 = vector.extract_strided_slice %217 {offsets = [0, 32], sizes = [8, 32], strides = [1, 1]} : vector<8x128xf32> to vector<8x32xf32>
    %220 = vector.extract_strided_slice %217 {offsets = [0, 64], sizes = [8, 32], strides = [1, 1]} : vector<8x128xf32> to vector<8x32xf32>
    %221 = vector.extract_strided_slice %217 {offsets = [0, 96], sizes = [8, 32], strides = [1, 1]} : vector<8x128xf32> to vector<8x32xf32>
    %222 = arith.mulf %219, %191 : vector<8x32xf32>
    %223 = arith.mulf %218, %220 : vector<8x32xf32>
    %224 = arith.addf %222, %223 : vector<8x32xf32>
    %225 = math.tanh %224 : vector<8x32xf32>
    %226 = arith.mulf %221, %225 : vector<8x32xf32>
    %227 = tpu.concatenate %226, %209 in 1 : vector<8x32xf32>, vector<8x32xf32> -> vector<8x64xf32>
    %228 = arith.truncf %227 : vector<8x64xf32> to vector<8x64xbf16>
    %cst_43 = arith.constant dense<0.000000e+00> : vector<8x128xf32>
    %229 = tpu.matmul %228, %1, %cst_43 {dimension_numbers = #tpu.dot_dimension_numbers<[1], [0], [0], [1], [0, 0, 1, 1], [], []>} : vector<8x64xbf16>, vector<64x128xbf16>, vector<8x128xf32> -> vector<8x128xf32>
    %230 = arith.addf %229, %4 : vector<8x128xf32>
    %231 = math.tanh %230 : vector<8x128xf32>
    %232 = arith.mulf %231, %8 : vector<8x128xf32>
    %233 = arith.addf %232, %10 : vector<8x128xf32>
    %234 = vector.extract_strided_slice %233 {offsets = [0, 0], sizes = [8, 32], strides = [1, 1]} : vector<8x128xf32> to vector<8x32xf32>
    %235 = vector.extract_strided_slice %233 {offsets = [0, 32], sizes = [8, 32], strides = [1, 1]} : vector<8x128xf32> to vector<8x32xf32>
    %236 = vector.extract_strided_slice %233 {offsets = [0, 64], sizes = [8, 32], strides = [1, 1]} : vector<8x128xf32> to vector<8x32xf32>
    %237 = vector.extract_strided_slice %233 {offsets = [0, 96], sizes = [8, 32], strides = [1, 1]} : vector<8x128xf32> to vector<8x32xf32>
    %238 = arith.mulf %235, %207 : vector<8x32xf32>
    %239 = arith.mulf %234, %236 : vector<8x32xf32>
    %240 = arith.addf %238, %239 : vector<8x32xf32>
    %241 = math.tanh %240 : vector<8x32xf32>
    %242 = arith.mulf %237, %241 : vector<8x32xf32>
    %c7 = arith.constant 7 : index
    %c0_44 = arith.constant 0 : index
    %c0_45 = arith.constant 0 : index
    %243 = vector.load %arg1[%c7, %c0_44, %c0_45] : memref<11x8x128xf32, #tpu.memory_space<vmem>>, vector<1x8x128xf32>
    %244 = vector.shape_cast %243 : vector<1x8x128xf32> to vector<8x128xf32>
    %245 = arith.truncf %226 : vector<8x32xf32> to vector<8x32xbf16>
    %cst_46 = arith.constant dense<0.000000e+00> : vector<8x128xf32>
    %246 = tpu.matmul %245, %0, %cst_46 {dimension_numbers = #tpu.dot_dimension_numbers<[1], [0], [0], [1], [0, 0, 1, 1], [], []>} : vector<8x32xbf16>, vector<32x128xbf16>, vector<8x128xf32> -> vector<8x128xf32>
    %247 = arith.addf %244, %246 : vector<8x128xf32>
    %248 = math.tanh %247 : vector<8x128xf32>
    %249 = arith.mulf %248, %8 : vector<8x128xf32>
    %250 = arith.addf %249, %10 : vector<8x128xf32>
    %251 = vector.extract_strided_slice %250 {offsets = [0, 0], sizes = [8, 32], strides = [1, 1]} : vector<8x128xf32> to vector<8x32xf32>
    %252 = vector.extract_strided_slice %250 {offsets = [0, 32], sizes = [8, 32], strides = [1, 1]} : vector<8x128xf32> to vector<8x32xf32>
    %253 = vector.extract_strided_slice %250 {offsets = [0, 64], sizes = [8, 32], strides = [1, 1]} : vector<8x128xf32> to vector<8x32xf32>
    %254 = vector.extract_strided_slice %250 {offsets = [0, 96], sizes = [8, 32], strides = [1, 1]} : vector<8x128xf32> to vector<8x32xf32>
    %255 = arith.mulf %252, %224 : vector<8x32xf32>
    %256 = arith.mulf %251, %253 : vector<8x32xf32>
    %257 = arith.addf %255, %256 : vector<8x32xf32>
    %258 = math.tanh %257 : vector<8x32xf32>
    %259 = arith.mulf %254, %258 : vector<8x32xf32>
    %260 = tpu.concatenate %259, %242 in 1 : vector<8x32xf32>, vector<8x32xf32> -> vector<8x64xf32>
    %261 = arith.truncf %260 : vector<8x64xf32> to vector<8x64xbf16>
    %cst_47 = arith.constant dense<0.000000e+00> : vector<8x128xf32>
    %262 = tpu.matmul %261, %1, %cst_47 {dimension_numbers = #tpu.dot_dimension_numbers<[1], [0], [0], [1], [0, 0, 1, 1], [], []>} : vector<8x64xbf16>, vector<64x128xbf16>, vector<8x128xf32> -> vector<8x128xf32>
    %263 = arith.addf %262, %4 : vector<8x128xf32>
    %264 = math.tanh %263 : vector<8x128xf32>
    %265 = arith.mulf %264, %8 : vector<8x128xf32>
    %266 = arith.addf %265, %10 : vector<8x128xf32>
    %267 = vector.extract_strided_slice %266 {offsets = [0, 0], sizes = [8, 32], strides = [1, 1]} : vector<8x128xf32> to vector<8x32xf32>
    %268 = vector.extract_strided_slice %266 {offsets = [0, 32], sizes = [8, 32], strides = [1, 1]} : vector<8x128xf32> to vector<8x32xf32>
    %269 = vector.extract_strided_slice %266 {offsets = [0, 64], sizes = [8, 32], strides = [1, 1]} : vector<8x128xf32> to vector<8x32xf32>
    %270 = vector.extract_strided_slice %266 {offsets = [0, 96], sizes = [8, 32], strides = [1, 1]} : vector<8x128xf32> to vector<8x32xf32>
    %271 = arith.mulf %268, %240 : vector<8x32xf32>
    %272 = arith.mulf %267, %269 : vector<8x32xf32>
    %273 = arith.addf %271, %272 : vector<8x32xf32>
    %274 = math.tanh %273 : vector<8x32xf32>
    %275 = arith.mulf %270, %274 : vector<8x32xf32>
    %cst_48 = arith.constant 0.000000e+00 : f32
    %276 = vector.broadcast %cst_48 : f32 to vector<8x32xf32>
    %277 = arith.maximumf %275, %276 : vector<8x32xf32>
    %278 = arith.truncf %277 : vector<8x32xf32> to vector<8x32xbf16>
    %cst_49 = arith.constant dense<0.000000e+00> : vector<8x128xf32>
    %279 = tpu.matmul %278, %2, %cst_49 {dimension_numbers = #tpu.dot_dimension_numbers<[1], [0], [0], [1], [0, 0, 1, 1], [], []>} : vector<8x32xbf16>, vector<32x128xbf16>, vector<8x128xf32> -> vector<8x128xf32>
    %280 = arith.addf %279, %6 : vector<8x128xf32>
    %c0_50 = arith.constant 0 : index
    %c0_51 = arith.constant 0 : index
    %c0_52 = arith.constant 0 : index
    %281 = vector.load %arg4[%c0_50, %c0_51, %c0_52] : memref<4x8x128xf32, #tpu.memory_space<vmem>>, vector<1x8x128xf32>
    %282 = vector.shape_cast %281 : vector<1x8x128xf32> to vector<8x128xf32>
    %283 = vector.shape_cast %280 : vector<8x128xf32> to vector<1x8x128xf32>
    tpu.vector_store %arg4[%c0_50, %c0_51, %c0_52], %283 {strides = array<i32>} : memref<4x8x128xf32, #tpu.memory_space<vmem>>, vector<1x8x128xf32>,
    %c8 = arith.constant 8 : index
    %c0_53 = arith.constant 0 : index
    %c0_54 = arith.constant 0 : index
    %284 = vector.load %arg1[%c8, %c0_53, %c0_54] : memref<11x8x128xf32, #tpu.memory_space<vmem>>, vector<1x8x128xf32>
    %285 = vector.shape_cast %284 : vector<1x8x128xf32> to vector<8x128xf32>
    %286 = arith.truncf %259 : vector<8x32xf32> to vector<8x32xbf16>
    %cst_55 = arith.constant dense<0.000000e+00> : vector<8x128xf32>
    %287 = tpu.matmul %286, %0, %cst_55 {dimension_numbers = #tpu.dot_dimension_numbers<[1], [0], [0], [1], [0, 0, 1, 1], [], []>} : vector<8x32xbf16>, vector<32x128xbf16>, vector<8x128xf32> -> vector<8x128xf32>
    %288 = arith.addf %285, %287 : vector<8x128xf32>
    %289 = math.tanh %288 : vector<8x128xf32>
    %290 = arith.mulf %289, %8 : vector<8x128xf32>
    %291 = arith.addf %290, %10 : vector<8x128xf32>
    %292 = vector.extract_strided_slice %291 {offsets = [0, 0], sizes = [8, 32], strides = [1, 1]} : vector<8x128xf32> to vector<8x32xf32>
    %293 = vector.extract_strided_slice %291 {offsets = [0, 32], sizes = [8, 32], strides = [1, 1]} : vector<8x128xf32> to vector<8x32xf32>
    %294 = vector.extract_strided_slice %291 {offsets = [0, 64], sizes = [8, 32], strides = [1, 1]} : vector<8x128xf32> to vector<8x32xf32>
    %295 = vector.extract_strided_slice %291 {offsets = [0, 96], sizes = [8, 32], strides = [1, 1]} : vector<8x128xf32> to vector<8x32xf32>
    %296 = arith.mulf %293, %257 : vector<8x32xf32>
    %297 = arith.mulf %292, %294 : vector<8x32xf32>
    %298 = arith.addf %296, %297 : vector<8x32xf32>
    %299 = math.tanh %298 : vector<8x32xf32>
    %300 = arith.mulf %295, %299 : vector<8x32xf32>
    %301 = tpu.concatenate %300, %275 in 1 : vector<8x32xf32>, vector<8x32xf32> -> vector<8x64xf32>
    %302 = arith.truncf %301 : vector<8x64xf32> to vector<8x64xbf16>
    %cst_56 = arith.constant dense<0.000000e+00> : vector<8x128xf32>
    %303 = tpu.matmul %302, %1, %cst_56 {dimension_numbers = #tpu.dot_dimension_numbers<[1], [0], [0], [1], [0, 0, 1, 1], [], []>} : vector<8x64xbf16>, vector<64x128xbf16>, vector<8x128xf32> -> vector<8x128xf32>
    %304 = arith.addf %303, %4 : vector<8x128xf32>
    %305 = math.tanh %304 : vector<8x128xf32>
    %306 = arith.mulf %305, %8 : vector<8x128xf32>
    %307 = arith.addf %306, %10 : vector<8x128xf32>
    %308 = vector.extract_strided_slice %307 {offsets = [0, 0], sizes = [8, 32], strides = [1, 1]} : vector<8x128xf32> to vector<8x32xf32>
    %309 = vector.extract_strided_slice %307 {offsets = [0, 32], sizes = [8, 32], strides = [1, 1]} : vector<8x128xf32> to vector<8x32xf32>
    %310 = vector.extract_strided_slice %307 {offsets = [0, 64], sizes = [8, 32], strides = [1, 1]} : vector<8x128xf32> to vector<8x32xf32>
    %311 = vector.extract_strided_slice %307 {offsets = [0, 96], sizes = [8, 32], strides = [1, 1]} : vector<8x128xf32> to vector<8x32xf32>
    %312 = arith.mulf %309, %273 : vector<8x32xf32>
    %313 = arith.mulf %308, %310 : vector<8x32xf32>
    %314 = arith.addf %312, %313 : vector<8x32xf32>
    %315 = math.tanh %314 : vector<8x32xf32>
    %316 = arith.mulf %311, %315 : vector<8x32xf32>
    %cst_57 = arith.constant 0.000000e+00 : f32
    %317 = vector.broadcast %cst_57 : f32 to vector<8x32xf32>
    %318 = arith.maximumf %316, %317 : vector<8x32xf32>
    %319 = arith.truncf %318 : vector<8x32xf32> to vector<8x32xbf16>
    %cst_58 = arith.constant dense<0.000000e+00> : vector<8x128xf32>
    %320 = tpu.matmul %319, %2, %cst_58 {dimension_numbers = #tpu.dot_dimension_numbers<[1], [0], [0], [1], [0, 0, 1, 1], [], []>} : vector<8x32xbf16>, vector<32x128xbf16>, vector<8x128xf32> -> vector<8x128xf32>
    %321 = arith.addf %320, %6 : vector<8x128xf32>
    %c1_59 = arith.constant 1 : index
    %c0_60 = arith.constant 0 : index
    %c0_61 = arith.constant 0 : index
    %322 = vector.load %arg4[%c1_59, %c0_60, %c0_61] : memref<4x8x128xf32, #tpu.memory_space<vmem>>, vector<1x8x128xf32>
    %323 = vector.shape_cast %322 : vector<1x8x128xf32> to vector<8x128xf32>
    %324 = vector.shape_cast %321 : vector<8x128xf32> to vector<1x8x128xf32>
    tpu.vector_store %arg4[%c1_59, %c0_60, %c0_61], %324 {strides = array<i32>} : memref<4x8x128xf32, #tpu.memory_space<vmem>>, vector<1x8x128xf32>,
    %c9 = arith.constant 9 : index
    %c0_62 = arith.constant 0 : index
    %c0_63 = arith.constant 0 : index
    %325 = vector.load %arg1[%c9, %c0_62, %c0_63] : memref<11x8x128xf32, #tpu.memory_space<vmem>>, vector<1x8x128xf32>
    %326 = vector.shape_cast %325 : vector<1x8x128xf32> to vector<8x128xf32>
    %327 = arith.truncf %300 : vector<8x32xf32> to vector<8x32xbf16>
    %cst_64 = arith.constant dense<0.000000e+00> : vector<8x128xf32>
    %328 = tpu.matmul %327, %0, %cst_64 {dimension_numbers = #tpu.dot_dimension_numbers<[1], [0], [0], [1], [0, 0, 1, 1], [], []>} : vector<8x32xbf16>, vector<32x128xbf16>, vector<8x128xf32> -> vector<8x128xf32>
    %329 = arith.addf %326, %328 : vector<8x128xf32>
    %330 = math.tanh %329 : vector<8x128xf32>
    %331 = arith.mulf %330, %8 : vector<8x128xf32>
    %332 = arith.addf %331, %10 : vector<8x128xf32>
    %333 = vector.extract_strided_slice %332 {offsets = [0, 0], sizes = [8, 32], strides = [1, 1]} : vector<8x128xf32> to vector<8x32xf32>
    %334 = vector.extract_strided_slice %332 {offsets = [0, 32], sizes = [8, 32], strides = [1, 1]} : vector<8x128xf32> to vector<8x32xf32>
    %335 = vector.extract_strided_slice %332 {offsets = [0, 64], sizes = [8, 32], strides = [1, 1]} : vector<8x128xf32> to vector<8x32xf32>
    %336 = vector.extract_strided_slice %332 {offsets = [0, 96], sizes = [8, 32], strides = [1, 1]} : vector<8x128xf32> to vector<8x32xf32>
    %337 = arith.mulf %334, %298 : vector<8x32xf32>
    %338 = arith.mulf %333, %335 : vector<8x32xf32>
    %339 = arith.addf %337, %338 : vector<8x32xf32>
    %340 = math.tanh %339 : vector<8x32xf32>
    %341 = arith.mulf %336, %340 : vector<8x32xf32>
    %342 = tpu.concatenate %341, %316 in 1 : vector<8x32xf32>, vector<8x32xf32> -> vector<8x64xf32>
    %343 = arith.truncf %342 : vector<8x64xf32> to vector<8x64xbf16>
    %cst_65 = arith.constant dense<0.000000e+00> : vector<8x128xf32>
    %344 = tpu.matmul %343, %1, %cst_65 {dimension_numbers = #tpu.dot_dimension_numbers<[1], [0], [0], [1], [0, 0, 1, 1], [], []>} : vector<8x64xbf16>, vector<64x128xbf16>, vector<8x128xf32> -> vector<8x128xf32>
    %345 = arith.addf %344, %4 : vector<8x128xf32>
    %346 = math.tanh %345 : vector<8x128xf32>
    %347 = arith.mulf %346, %8 : vector<8x128xf32>
    %348 = arith.addf %347, %10 : vector<8x128xf32>
    %349 = vector.extract_strided_slice %348 {offsets = [0, 0], sizes = [8, 32], strides = [1, 1]} : vector<8x128xf32> to vector<8x32xf32>
    %350 = vector.extract_strided_slice %348 {offsets = [0, 32], sizes = [8, 32], strides = [1, 1]} : vector<8x128xf32> to vector<8x32xf32>
    %351 = vector.extract_strided_slice %348 {offsets = [0, 64], sizes = [8, 32], strides = [1, 1]} : vector<8x128xf32> to vector<8x32xf32>
    %352 = vector.extract_strided_slice %348 {offsets = [0, 96], sizes = [8, 32], strides = [1, 1]} : vector<8x128xf32> to vector<8x32xf32>
    %353 = arith.mulf %350, %314 : vector<8x32xf32>
    %354 = arith.mulf %349, %351 : vector<8x32xf32>
    %355 = arith.addf %353, %354 : vector<8x32xf32>
    %356 = math.tanh %355 : vector<8x32xf32>
    %357 = arith.mulf %352, %356 : vector<8x32xf32>
    %cst_66 = arith.constant 0.000000e+00 : f32
    %358 = vector.broadcast %cst_66 : f32 to vector<8x32xf32>
    %359 = arith.maximumf %357, %358 : vector<8x32xf32>
    %360 = arith.truncf %359 : vector<8x32xf32> to vector<8x32xbf16>
    %cst_67 = arith.constant dense<0.000000e+00> : vector<8x128xf32>
    %361 = tpu.matmul %360, %2, %cst_67 {dimension_numbers = #tpu.dot_dimension_numbers<[1], [0], [0], [1], [0, 0, 1, 1], [], []>} : vector<8x32xbf16>, vector<32x128xbf16>, vector<8x128xf32> -> vector<8x128xf32>
    %362 = arith.addf %361, %6 : vector<8x128xf32>
    %c2_68 = arith.constant 2 : index
    %c0_69 = arith.constant 0 : index
    %c0_70 = arith.constant 0 : index
    %363 = vector.load %arg4[%c2_68, %c0_69, %c0_70] : memref<4x8x128xf32, #tpu.memory_space<vmem>>, vector<1x8x128xf32>
    %364 = vector.shape_cast %363 : vector<1x8x128xf32> to vector<8x128xf32>
    %365 = vector.shape_cast %362 : vector<8x128xf32> to vector<1x8x128xf32>
    tpu.vector_store %arg4[%c2_68, %c0_69, %c0_70], %365 {strides = array<i32>} : memref<4x8x128xf32, #tpu.memory_space<vmem>>, vector<1x8x128xf32>,
    %c10 = arith.constant 10 : index
    %c0_71 = arith.constant 0 : index
    %c0_72 = arith.constant 0 : index
    %366 = vector.load %arg1[%c10, %c0_71, %c0_72] : memref<11x8x128xf32, #tpu.memory_space<vmem>>, vector<1x8x128xf32>
    %367 = vector.shape_cast %366 : vector<1x8x128xf32> to vector<8x128xf32>
    %368 = arith.truncf %341 : vector<8x32xf32> to vector<8x32xbf16>
    %cst_73 = arith.constant dense<0.000000e+00> : vector<8x128xf32>
    %369 = tpu.matmul %368, %0, %cst_73 {dimension_numbers = #tpu.dot_dimension_numbers<[1], [0], [0], [1], [0, 0, 1, 1], [], []>} : vector<8x32xbf16>, vector<32x128xbf16>, vector<8x128xf32> -> vector<8x128xf32>
    %370 = arith.addf %367, %369 : vector<8x128xf32>
    %371 = math.tanh %370 : vector<8x128xf32>
    %372 = arith.mulf %371, %8 : vector<8x128xf32>
    %373 = arith.addf %372, %10 : vector<8x128xf32>
    %374 = vector.extract_strided_slice %373 {offsets = [0, 0], sizes = [8, 32], strides = [1, 1]} : vector<8x128xf32> to vector<8x32xf32>
    %375 = vector.extract_strided_slice %373 {offsets = [0, 32], sizes = [8, 32], strides = [1, 1]} : vector<8x128xf32> to vector<8x32xf32>
    %376 = vector.extract_strided_slice %373 {offsets = [0, 64], sizes = [8, 32], strides = [1, 1]} : vector<8x128xf32> to vector<8x32xf32>
    %377 = vector.extract_strided_slice %373 {offsets = [0, 96], sizes = [8, 32], strides = [1, 1]} : vector<8x128xf32> to vector<8x32xf32>
    %378 = arith.mulf %375, %339 : vector<8x32xf32>
    %379 = arith.mulf %374, %376 : vector<8x32xf32>
    %380 = arith.addf %378, %379 : vector<8x32xf32>
    %381 = math.tanh %380 : vector<8x32xf32>
    %382 = arith.mulf %377, %381 : vector<8x32xf32>
    %383 = tpu.concatenate %382, %357 in 1 : vector<8x32xf32>, vector<8x32xf32> -> vector<8x64xf32>
    %384 = arith.truncf %383 : vector<8x64xf32> to vector<8x64xbf16>
    %cst_74 = arith.constant dense<0.000000e+00> : vector<8x128xf32>
    %385 = tpu.matmul %384, %1, %cst_74 {dimension_numbers = #tpu.dot_dimension_numbers<[1], [0], [0], [1], [0, 0, 1, 1], [], []>} : vector<8x64xbf16>, vector<64x128xbf16>, vector<8x128xf32> -> vector<8x128xf32>
    %386 = arith.addf %385, %4 : vector<8x128xf32>
    %387 = math.tanh %386 : vector<8x128xf32>
    %388 = arith.mulf %387, %8 : vector<8x128xf32>
    %389 = arith.addf %388, %10 : vector<8x128xf32>
    %390 = vector.extract_strided_slice %389 {offsets = [0, 0], sizes = [8, 32], strides = [1, 1]} : vector<8x128xf32> to vector<8x32xf32>
    %391 = vector.extract_strided_slice %389 {offsets = [0, 32], sizes = [8, 32], strides = [1, 1]} : vector<8x128xf32> to vector<8x32xf32>
    %392 = vector.extract_strided_slice %389 {offsets = [0, 64], sizes = [8, 32], strides = [1, 1]} : vector<8x128xf32> to vector<8x32xf32>
    %393 = vector.extract_strided_slice %389 {offsets = [0, 96], sizes = [8, 32], strides = [1, 1]} : vector<8x128xf32> to vector<8x32xf32>
    %394 = arith.mulf %391, %355 : vector<8x32xf32>
    %395 = arith.mulf %390, %392 : vector<8x32xf32>
    %396 = arith.addf %394, %395 : vector<8x32xf32>
    %397 = math.tanh %396 : vector<8x32xf32>
    %398 = arith.mulf %393, %397 : vector<8x32xf32>
    %cst_75 = arith.constant 0.000000e+00 : f32
    %399 = vector.broadcast %cst_75 : f32 to vector<8x32xf32>
    %400 = arith.maximumf %398, %399 : vector<8x32xf32>
    %401 = arith.truncf %400 : vector<8x32xf32> to vector<8x32xbf16>
    %cst_76 = arith.constant dense<0.000000e+00> : vector<8x128xf32>
    %402 = tpu.matmul %401, %2, %cst_76 {dimension_numbers = #tpu.dot_dimension_numbers<[1], [0], [0], [1], [0, 0, 1, 1], [], []>} : vector<8x32xbf16>, vector<32x128xbf16>, vector<8x128xf32> -> vector<8x128xf32>
    %403 = arith.addf %402, %6 : vector<8x128xf32>
    %c3_77 = arith.constant 3 : index
    %c0_78 = arith.constant 0 : index
    %c0_79 = arith.constant 0 : index
    %404 = vector.load %arg4[%c3_77, %c0_78, %c0_79] : memref<4x8x128xf32, #tpu.memory_space<vmem>>, vector<1x8x128xf32>
    %405 = vector.shape_cast %404 : vector<1x8x128xf32> to vector<8x128xf32>
    %406 = vector.shape_cast %403 : vector<8x128xf32> to vector<1x8x128xf32>
    tpu.vector_store %arg4[%c3_77, %c0_78, %c0_79], %406 {strides = array<i32>} : memref<4x8x128xf32, #tpu.memory_space<vmem>>, vector<1x8x128xf32>,
    return
  }
  func.func @transform_0(%arg0: i32) -> (i32, i32, i32) {
    %c0_i32 = arith.constant 0 : i32
    %c0_i32_0 = arith.constant 0 : i32
    %c0_i32_1 = arith.constant 0 : i32
    %c0_i32_2 = arith.constant 0 : i32
    return %c0_i32, %c0_i32_0, %c0_i32_1 : i32, i32, i32
  }
  func.func @transform_1(%arg0: i32) -> (i32, i32) {
    %c0_i32 = arith.constant 0 : i32
    %c0_i32_0 = arith.constant 0 : i32
    %c0_i32_1 = arith.constant 0 : i32
    return %c0_i32, %c0_i32_0 : i32, i32
  }
  func.func @transform_2(%arg0: i32) -> (i32, i32, i32) {
    %c0_i32 = arith.constant 0 : i32
    %c0_i32_0 = arith.constant 0 : i32
    %c0_i32_1 = arith.constant 0 : i32
    %c0_i32_2 = arith.constant 0 : i32
    return %c0_i32, %c0_i32_0, %c0_i32_1 : i32, i32, i32
  }
  func.func @transform_3(%arg0: i32) -> (i32, i32, i32) {
    %c0_i32 = arith.constant 0 : i32
    %c0_i32_0 = arith.constant 0 : i32
    %c0_i32_1 = arith.constant 0 : i32
    %c0_i32_2 = arith.constant 0 : i32
    return %c0_i32, %c0_i32_0, %c0_i32_1 : i32, i32, i32
  }
}

</mosaic_0001>

<llo_original>
// kernel: tpu_custom_call.1
$region0: #{tpu_custom_call.1}
  #allocation0 [shape = 'u32[]', space=smem, size = 0x4, offset = 0x4, fixed_abs, tag = 'smem constant byte address 0x4 - core index']
  #allocation1 [shape = 'u32[72,128]{1,0:T(1,128)}', space=vmem, size = 0x9000, scoped, tag = 'internal scratch']
  %s0 = inlined_call_operand.hbm [shape: f32[11,8,128], index: 0, kind: input, shape index: {}]
  %s1 = inlined_call_operand.hbm [shape: bf16[128,128], index: 1, kind: input, shape index: {}]
  %s2 = inlined_call_operand.hbm [shape: f32[4,8,128], index: 2, kind: input, shape index: {}]
  %s3 = inlined_call_operand.hbm [shape: f32[4,8,128], index: 3, kind: output, shape index: {}]
  %s4 = sld [smem:[#allocation0]]
  $region34: #{tpu_custom_call.1} parent=0
    _
  %s6 = ssub.s32 1, %s4
  %s7 = scalar_select 0, %s6, %s4
  $region1: #{tpu_custom_call.1} parent=0
    #allocation2 [shape = 'u8[45056]{0}', space=vmem, size = 0xb000, scoped, tag = 'input window, operand 0, single buffered']
    #allocation3 [shape = 's32[1]{0}', space=sflag, size = 0x4, scoped, tag = 'scoped memory for tpu_custom_call.1']
    #allocation4 [shape = 's32[1]{0}', space=sflag, size = 0x4, scoped, tag = 'scoped memory for tpu_custom_call.1']
    #allocation5 [shape = 'u8[32768]{0}', space=vmem, size = 0x8000, scoped, tag = 'input window, operand 1, single buffered']
    #allocation6 [shape = 's32[1]{0}', space=sflag, size = 0x4, scoped, tag = 'scoped memory for tpu_custom_call.1']
    #allocation7 [shape = 'u8[16384]{0}', space=vmem, size = 0x4000, scoped, tag = 'input window, operand 2, single buffered']
    #allocation8 [shape = 'u8[16384]{0}', space=vmem, size = 0x4000, scoped, tag = 'output window, operand 0, single buffered']
    %8 = vsyncpa [#allocation3], 0
    %9 = vsyncpa [#allocation6], 0
    %10 = vsyncpa [#allocation4], 0
    // Predicated region
    $region2: #{tpu_custom_call.1} parent=1 // pred_check
      _
    $region3: #{tpu_custom_call.1} parent=1 // pred_check_branch
      %12 = sbr.rel (0) target = $region5
    $region4: #{tpu_custom_call.1} parent=1 // pred_region
      %14 = vsyncadd [#allocation3], 0
      %s15 = sshll.u32 %s0, 4
      %s16 = int_to_ptr.hbm [resolvable:$true] %s15
      %s17 = sshll.u32 [#allocation2], 4
      %s18 = int_to_ptr.vmem [resolvable:$true] %s17
      %23 = dma.hbm_to_vmem [thread:$0]  %s16, 1408, %s18, [#allocation3], 128, 128, 8
    $region5: #{tpu_custom_call.1} parent=1 // pred_fallthru
      _
    // Predicated region
    $region6: #{tpu_custom_call.1} parent=1 // pred_check
      _
    $region7: #{tpu_custom_call.1} parent=1 // pred_check_branch
      %25 = sbr.rel (0) target = $region9
    $region8: #{tpu_custom_call.1} parent=1 // pred_region
      %27 = vsyncadd [#allocation6], 0
      %s28 = sshll.u32 %s1, 4
      %s29 = int_to_ptr.hbm [resolvable:$true] %s28
      %s30 = sshll.u32 [#allocation5], 4
      %s31 = int_to_ptr.vmem [resolvable:$true] %s30
      %36 = dma.hbm_to_vmem [thread:$0]  %s29, 1024, %s31, [#allocation6], 64, 64, 4
    $region9: #{tpu_custom_call.1} parent=1 // pred_fallthru
      _
    // Predicated region
    $region10: #{tpu_custom_call.1} parent=1 // pred_check
      _
    $region11: #{tpu_custom_call.1} parent=1 // pred_check_branch
      %38 = sbr.rel (0) target = $region13
    $region12: #{tpu_custom_call.1} parent=1 // pred_region
      %40 = vsyncadd [#allocation6], 0
      %s41 = sshll.u32 %s2, 4
      %s42 = int_to_ptr.hbm [resolvable:$true] %s41
      %s43 = sshll.u32 [#allocation7], 4
      %s44 = int_to_ptr.vmem [resolvable:$true] %s43
      %49 = dma.hbm_to_vmem [thread:$0]  %s42, 512, %s44, [#allocation6], 128, 128, 8
    $region13: #{tpu_custom_call.1} parent=1 // pred_fallthru
      _
    // Predicated region
    $region14: #{tpu_custom_call.1} parent=1 // pred_check
      _
    $region15: #{tpu_custom_call.1} parent=1 // pred_check_branch
      %51 = sbr.rel (0) target = $region17
    $region16: #{tpu_custom_call.1} parent=1 // pred_region
      %53 = dma.done [#allocation3], 1408
    $region17: #{tpu_custom_call.1} parent=1 // pred_fallthru
      _
    // Predicated region
    $region18: #{tpu_custom_call.1} parent=1 // pred_check
      _
    $region19: #{tpu_custom_call.1} parent=1 // pred_check_branch
      %55 = sbr.rel (0) target = $region21
    $region20: #{tpu_custom_call.1} parent=1 // pred_region
      %57 = dma.done [#allocation6], 1024
    $region21: #{tpu_custom_call.1} parent=1 // pred_fallthru
      _
    // Predicated region
    $region22: #{tpu_custom_call.1} parent=1 // pred_check
      _
    $region23: #{tpu_custom_call.1} parent=1 // pred_check_branch
      %59 = sbr.rel (0) target = $region25
    $region24: #{tpu_custom_call.1} parent=1 // pred_region
      %61 = dma.done [#allocation6], 512
    $region25: #{tpu_custom_call.1} parent=1 // pred_fallthru
      _
    %v63 = vld [vmem:[#allocation5] sm:$0xf]
    %v64 = vld [vmem:[#allocation5 + $0x4] sm:$0xf]
    %v65 = vld [vmem:[#allocation5 + $0x8] sm:$0xf]
    %v66 = vld [vmem:[#allocation5 + $0xc] sm:$0xf]
    %v67 = vld [vmem:[#allocation5 + $0x10] sm:$0xf]
    %v68 = vld [vmem:[#allocation5 + $0x14] sm:$0xf]
    %v69 = vld [vmem:[#allocation5 + $0x18] sm:$0xf]
    %v70 = vld [vmem:[#allocation5 + $0x1c] sm:$0xf]
    %v71 = vld [vmem:[#allocation5 + $0x20] sm:$0xf]
    %v72 = vld [vmem:[#allocation5 + $0x24] sm:$0xf]
    %v73 = vld [vmem:[#allocation5 + $0x28] sm:$0xf]
    %v74 = vld [vmem:[#allocation5 + $0x2c] sm:$0xf]
    %v75 = vld [vmem:[#allocation5 + $0x30] sm:$0xf]
    %v76 = vld [vmem:[#allocation5 + $0x34] sm:$0xf]
    %v77 = vld [vmem:[#allocation5 + $0x38] sm:$0xf]
    %v78 = vld [vmem:[#allocation5 + $0x3c] sm:$0xf]
    %v79 = vld [vmem:[#allocation7] sm:$0xff]
    %s80 = scalar_lea.vmem [#allocation7], 8
    %v81 = vld [vmem:[%s80] sm:$0xff]
    %s82 = scalar_lea.vmem [#allocation7], 16
    %v83 = vld [vmem:[%s82] sm:$0xff]
    %s84 = scalar_lea.vmem [#allocation7], 24
    %v85 = vld [vmem:[%s84] sm:$0xff]
    %v86 = vld [vmem:[#allocation2] sm:$0xff]
    %v91 = vunpack.c.l.b16 %v63
    %v92 = vunpack.c.l.b16 %v64
    %v93 = vunpack.c.l.b16 %v65
    %v94 = vunpack.c.l.b16 %v66
    %v95 = vpack.c.b16 %v92, %v91
    %v96 = vpack.c.b16 %v94, %v93
    %vm99 = vcmask 261120
    %v101 = vsel %vm99, 0, 0
    %103 = vmatpush.bf16.msra.mxu0 0
    %104 = vmatpush.bf16.msra.mxu0 0
    %105 = vmatpush.bf16.msra.mxu0 0
    %106 = vmatpush.bf16.msra.mxu0 0
    %107 = vmatpush.bf16.msra.mxu0 0
    %108 = vmatpush.bf16.msra.mxu0 0
    %109 = vmatpush.bf16.msra.mxu0 %v96
    %110 = vmatpush.bf16.msra.mxu0 %v95
    %111 = vmatmul.bf16.gmra.mxu0 %v101
    %v112 = vpop.f32.mrf.mxu0
    %v113 = vadd.f32 0.0, %v112
    %v114 = vpop.f32.mrf.mxu0
    %115 = vdwg.mxu0
    %v116 = vadd.f32 %v86, %v113
    %v117 = vtanh.pop %v116
    %v118 = vmul.f32 %v117, %v83
    %v119 = vadd.f32 %v118, %v85
    %v120 = vmul.f32 %v119, 0.0
    %122 = vrot.lane.b32.xlu0 %v119, 64
    %v123 = vpop.permute.xlu0 %122
    %v125 = vmul.f32 %v119, %v123
    %127 = vrot.lane.b32.xlu0 %v125, 32
    %v128 = vpop.permute.xlu0 %127
    %v130 = vadd.f32 %v120, %v128
    %v131 = vtanh.pop %v130
    %133 = vrot.lane.b32.xlu0 %v131, 64
    %v134 = vpop.permute.xlu0 %133
    %v136 = vmul.f32 %v119, %v134
    %138 = vrot.lane.b32.xlu0 %v136, 32
    %v139 = vpop.permute.xlu0 %138
    %v141 = vsel %vm99, %v139, 0.0
    %v142 = vpack.c.bf16 %v141, %v141
    %v151 = vunpack.c.l.b16 %v67
    %v152 = vunpack.c.l.b16 %v68
    %v153 = vunpack.c.l.b16 %v69
    %v154 = vunpack.c.l.b16 %v70
    %v155 = vunpack.c.l.b16 %v71
    %v156 = vunpack.c.l.b16 %v72
    %v157 = vunpack.c.l.b16 %v73
    %v158 = vunpack.c.l.b16 %v74
    %v159 = vpack.c.b16 %v152, %v151
    %v160 = vpack.c.b16 %v154, %v153
    %v161 = vpack.c.b16 %v156, %v155
    %v162 = vpack.c.b16 %v158, %v157
    %vm167 = vcmask 523264
    %v169 = vsel %vm167, %v142, 0
    %171 = vmatpush.bf16.msra.mxu0 0
    %172 = vmatpush.bf16.msra.mxu0 0
    %173 = vmatpush.bf16.msra.mxu0 0
    %174 = vmatpush.bf16.msra.mxu0 0
    %175 = vmatpush.bf16.msra.mxu0 %v162
    %176 = vmatpush.bf16.msra.mxu0 %v161
    %177 = vmatpush.bf16.msra.mxu0 %v160
    %178 = vmatpush.bf16.msra.mxu0 %v159
    %179 = vmatmul.bf16.gmra.mxu0 %v169
    %v180 = vpop.f32.mrf.mxu0
    %v181 = vadd.f32 %v79, %v180
    %v182 = vpop.f32.mrf.mxu0
    %183 = vdwg.mxu0
    %v184 = vtanh.pop %v181
    %v185 = vmul.f32 %v184, %v83
    %v186 = vadd.f32 %v185, %v85
    %v187 = vmul.f32 %v186, 0.0
    %189 = vrot.lane.b32.xlu0 %v186, 64
    %v190 = vpop.permute.xlu0 %189
    %v192 = vmul.f32 %v186, %v190
    %194 = vrot.lane.b32.xlu0 %v192, 32
    %v195 = vpop.permute.xlu0 %194
    %v197 = vadd.f32 %v187, %v195
    %v198 = vtanh.pop %v197
    %200 = vrot.lane.b32.xlu0 %v198, 64
    %v201 = vpop.permute.xlu0 %200
    %v203 = vmul.f32 %v186, %v201
    %s204 = scalar_lea.vmem [#allocation2], 8
    %v205 = vld [vmem:[%s204] sm:$0xff]
    %v206 = vpack.c.bf16 %v136, %v136
    %208 = vrot.lane.b32.xlu0 %v206, 32
    %v209 = vpop.permute.xlu0 %208
    %v211 = vsel %vm99, %v209, 0
    %213 = vmatpush.bf16.msra.mxu0 0
    %214 = vmatpush.bf16.msra.mxu0 0
    %215 = vmatpush.bf16.msra.mxu0 0
    %216 = vmatpush.bf16.msra.mxu0 0
    %217 = vmatpush.bf16.msra.mxu0 0
    %218 = vmatpush.bf16.msra.mxu0 0
    %219 = vmatpush.bf16.msra.mxu0 %v96
    %220 = vmatpush.bf16.msra.mxu0 %v95
    %221 = vmatmul.bf16.gmra.mxu0 %v211
    %v222 = vpop.f32.mrf.mxu0
    %v223 = vadd.f32 0.0, %v222
    %v224 = vpop.f32.mrf.mxu0
    %225 = vdwg.mxu0
    %v226 = vadd.f32 %v205, %v223
    %v227 = vtanh.pop %v226
    %v228 = vmul.f32 %v227, %v83
    %v229 = vadd.f32 %v228, %v85
    %v230 = vmul.f32 %v229, %v130
    %232 = vrot.lane.b32.xlu0 %v229, 64
    %v233 = vpop.permute.xlu0 %232
    %v235 = vmul.f32 %v229, %v233
    %237 = vrot.lane.b32.xlu0 %v235, 32
    %v238 = vpop.permute.xlu0 %237
    %v240 = vadd.f32 %v230, %v238
    %v241 = vtanh.pop %v240
    %243 = vrot.lane.b32.xlu0 %v241, 64
    %v244 = vpop.permute.xlu0 %243
    %v246 = vmul.f32 %v229, %v244
    %248 = vrot.lane.b32.xlu0 %v246, 32
    %v249 = vpop.permute.xlu0 %248
    %252 = vrot.lane.b32.xlu0 %v203, 64
    %v253 = vpop.permute.xlu0 %252
    %v255 = vsel %vm99, %v249, %v253
    %v256 = vpack.c.bf16 %v255, %v255
    %v258 = vsel %vm167, %v256, 0
    %260 = vmatpush.bf16.msra.mxu0 0
    %261 = vmatpush.bf16.msra.mxu0 0
    %262 = vmatpush.bf16.msra.mxu0 0
    %263 = vmatpush.bf16.msra.mxu0 0
    %264 = vmatpush.bf16.msra.mxu0 %v162
    %265 = vmatpush.bf16.msra.mxu0 %v161
    %266 = vmatpush.bf16.msra.mxu0 %v160
    %267 = vmatpush.bf16.msra.mxu0 %v159
    %268 = vmatmul.bf16.gmra.mxu0 %v258
    %v269 = vpop.f32.mrf.mxu0
    %v270 = vadd.f32 %v79, %v269
    %v271 = vpop.f32.mrf.mxu0
    %272 = vdwg.mxu0
    %v273 = vtanh.pop %v270
    %v274 = vmul.f32 %v273, %v83
    %v275 = vadd.f32 %v274, %v85
    %v276 = vmul.f32 %v275, %v197
    %278 = vrot.lane.b32.xlu0 %v275, 64
    %v279 = vpop.permute.xlu0 %278
    %v281 = vmul.f32 %v275, %v279
    %283 = vrot.lane.b32.xlu0 %v281, 32
    %v284 = vpop.permute.xlu0 %283
    %v286 = vadd.f32 %v276, %v284
    %v287 = vtanh.pop %v286
    %289 = vrot.lane.b32.xlu0 %v287, 64
    %v290 = vpop.permute.xlu0 %289
    %v292 = vmul.f32 %v275, %v290
    %s293 = scalar_lea.vmem [#allocation2], 16
    %v294 = vld [vmem:[%s293] sm:$0xff]
    %v295 = vpack.c.bf16 %v246, %v246
    %297 = vrot.lane.b32.xlu0 %v295, 32
    %v298 = vpop.permute.xlu0 %297
    %v300 = vsel %vm99, %v298, 0
    %302 = vmatpush.bf16.msra.mxu0 0
    %303 = vmatpush.bf16.msra.mxu0 0
    %304 = vmatpush.bf16.msra.mxu0 0
    %305 = vmatpush.bf16.msra.mxu0 0
    %306 = vmatpush.bf16.msra.mxu0 0
    %307 = vmatpush.bf16.msra.mxu0 0
    %308 = vmatpush.bf16.msra.mxu0 %v96
    %309 = vmatpush.bf16.msra.mxu0 %v95
    %310 = vmatmul.bf16.gmra.mxu0 %v300
    %v311 = vpop.f32.mrf.mxu0
    %v312 = vadd.f32 0.0, %v311
    %v313 = vpop.f32.mrf.mxu0
    %314 = vdwg.mxu0
    %v315 = vadd.f32 %v294, %v312
    %v316 = vtanh.pop %v315
    %v317 = vmul.f32 %v316, %v83
    %v318 = vadd.f32 %v317, %v85
    %v319 = vmul.f32 %v318, %v240
    %321 = vrot.lane.b32.xlu0 %v318, 64
    %v322 = vpop.permute.xlu0 %321
    %v324 = vmul.f32 %v318, %v322
    %326 = vrot.lane.b32.xlu0 %v324, 32
    %v327 = vpop.permute.xlu0 %326
    %v329 = vadd.f32 %v319, %v327
    %v330 = vtanh.pop %v329
    %332 = vrot.lane.b32.xlu0 %v330, 64
    %v333 = vpop.permute.xlu0 %332
    %v335 = vmul.f32 %v318, %v333
    %337 = vrot.lane.b32.xlu0 %v335, 32
    %v338 = vpop.permute.xlu0 %337
    %341 = vrot.lane.b32.xlu0 %v292, 64
    %v342 = vpop.permute.xlu0 %341
    %v344 = vsel %vm99, %v338, %v342
    %v345 = vpack.c.bf16 %v344, %v344
    %v347 = vsel %vm167, %v345, 0
    %349 = vmatpush.bf16.msra.mxu0 0
    %350 = vmatpush.bf16.msra.mxu0 0
    %351 = vmatpush.bf16.msra.mxu0 0
    %352 = vmatpush.bf16.msra.mxu0 0
    %353 = vmatpush.bf16.msra.mxu0 %v162
    %354 = vmatpush.bf16.msra.mxu0 %v161
    %355 = vmatpush.bf16.msra.mxu0 %v160
    %356 = vmatpush.bf16.msra.mxu0 %v159
    %357 = vmatmul.bf16.gmra.mxu0 %v347
    %v358 = vpop.f32.mrf.mxu0
    %v359 = vadd.f32 %v79, %v358
    %v360 = vpop.f32.mrf.mxu0
    %361 = vdwg.mxu0
    %v362 = vtanh.pop %v359
    %v363 = vmul.f32 %v362, %v83
    %v364 = vadd.f32 %v363, %v85
    %v365 = vmul.f32 %v364, %v286
    %367 = vrot.lane.b32.xlu0 %v364, 64
    %v368 = vpop.permute.xlu0 %367
    %v370 = vmul.f32 %v364, %v368
    %372 = vrot.lane.b32.xlu0 %v370, 32
    %v373 = vpop.permute.xlu0 %372
    %v375 = vadd.f32 %v365, %v373
    %v376 = vtanh.pop %v375
    %378 = vrot.lane.b32.xlu0 %v376, 64
    %v379 = vpop.permute.xlu0 %378
    %v381 = vmul.f32 %v364, %v379
    %s382 = scalar_lea.vmem [#allocation2], 24
    %v383 = vld [vmem:[%s382] sm:$0xff]
    %v384 = vpack.c.bf16 %v335, %v335
    %386 = vrot.lane.b32.xlu0 %v384, 32
    %v387 = vpop.permute.xlu0 %386
    %v389 = vsel %vm99, %v387, 0
    %391 = vmatpush.bf16.msra.mxu0 0
    %392 = vmatpush.bf16.msra.mxu0 0
    %393 = vmatpush.bf16.msra.mxu0 0
    %394 = vmatpush.bf16.msra.mxu0 0
    %395 = vmatpush.bf16.msra.mxu0 0
    %396 = vmatpush.bf16.msra.mxu0 0
    %397 = vmatpush.bf16.msra.mxu0 %v96
    %398 = vmatpush.bf16.msra.mxu0 %v95
    %399 = vmatmul.bf16.gmra.mxu0 %v389
    %v400 = vpop.f32.mrf.mxu0
    %v401 = vadd.f32 0.0, %v400
    %v402 = vpop.f32.mrf.mxu0
    %403 = vdwg.mxu0
    %v404 = vadd.f32 %v383, %v401
    %v405 = vtanh.pop %v404
    %v406 = vmul.f32 %v405, %v83
    %v407 = vadd.f32 %v406, %v85
    %v408 = vmul.f32 %v407, %v329
    %410 = vrot.lane.b32.xlu0 %v407, 64
    %v411 = vpop.permute.xlu0 %410
    %v413 = vmul.f32 %v407, %v411
    %415 = vrot.lane.b32.xlu0 %v413, 32
    %v416 = vpop.permute.xlu0 %415
    %v418 = vadd.f32 %v408, %v416
    %v419 = vtanh.pop %v418
    %421 = vrot.lane.b32.xlu0 %v419, 64
    %v422 = vpop.permute.xlu0 %421
    %v424 = vmul.f32 %v407, %v422
    %426 = vrot.lane.b32.xlu0 %v424, 32
    %v427 = vpop.permute.xlu0 %426
    %430 = vrot.lane.b32.xlu0 %v381, 64
    %v431 = vpop.permute.xlu0 %430
    %v433 = vsel %vm99, %v427, %v431
    %v434 = vpack.c.bf16 %v433, %v433
    %v436 = vsel %vm167, %v434, 0
    %438 = vmatpush.bf16.msra.mxu0 0
    %439 = vmatpush.bf16.msra.mxu0 0
    %440 = vmatpush.bf16.msra.mxu0 0
    %441 = vmatpush.bf16.msra.mxu0 0
    %442 = vmatpush.bf16.msra.mxu0 %v162
    %443 = vmatpush.bf16.msra.mxu0 %v161
    %444 = vmatpush.bf16.msra.mxu0 %v160
    %445 = vmatpush.bf16.msra.mxu0 %v159
    %446 = vmatmul.bf16.gmra.mxu0 %v436
    %v447 = vpop.f32.mrf.mxu0
    %v448 = vadd.f32 %v79, %v447
    %v449 = vpop.f32.mrf.mxu0
    %450 = vdwg.mxu0
    %v451 = vtanh.pop %v448
    %v452 = vmul.f32 %v451, %v83
    %v453 = vadd.f32 %v452, %v85
    %v454 = vmul.f32 %v453, %v375
    %456 = vrot.lane.b32.xlu0 %v453, 64
    %v457 = vpop.permute.xlu0 %456
    %v459 = vmul.f32 %v453, %v457
    %461 = vrot.lane.b32.xlu0 %v459, 32
    %v462 = vpop.permute.xlu0 %461
    %v464 = vadd.f32 %v454, %v462
    %v465 = vtanh.pop %v464
    %467 = vrot.lane.b32.xlu0 %v465, 64
    %v468 = vpop.permute.xlu0 %467
    %v470 = vmul.f32 %v453, %v468
    %s471 = scalar_lea.vmem [#allocation2], 32
    %v472 = vld [vmem:[%s471] sm:$0xff]
    %v473 = vpack.c.bf16 %v424, %v424
    %475 = vrot.lane.b32.xlu0 %v473, 32
    %v476 = vpop.permute.xlu0 %475
    %v478 = vsel %vm99, %v476, 0
    %480 = vmatpush.bf16.msra.mxu0 0
    %481 = vmatpush.bf16.msra.mxu0 0
    %482 = vmatpush.bf16.msra.mxu0 0
    %483 = vmatpush.bf16.msra.mxu0 0
    %484 = vmatpush.bf16.msra.mxu0 0
    %485 = vmatpush.bf16.msra.mxu0 0
    %486 = vmatpush.bf16.msra.mxu0 %v96
    %487 = vmatpush.bf16.msra.mxu0 %v95
    %488 = vmatmul.bf16.gmra.mxu0 %v478
    %v489 = vpop.f32.mrf.mxu0
    %v490 = vadd.f32 0.0, %v489
    %v491 = vpop.f32.mrf.mxu0
    %492 = vdwg.mxu0
    %v493 = vadd.f32 %v472, %v490
    %v494 = vtanh.pop %v493
    %v495 = vmul.f32 %v494, %v83
    %v496 = vadd.f32 %v495, %v85
    %v497 = vmul.f32 %v496, %v418
    %499 = vrot.lane.b32.xlu0 %v496, 64
    %v500 = vpop.permute.xlu0 %499
    %v502 = vmul.f32 %v496, %v500
    %504 = vrot.lane.b32.xlu0 %v502, 32
    %v505 = vpop.permute.xlu0 %504
    %v507 = vadd.f32 %v497, %v505
    %v508 = vtanh.pop %v507
    %510 = vrot.lane.b32.xlu0 %v508, 64
    %v511 = vpop.permute.xlu0 %510
    %v513 = vmul.f32 %v496, %v511
    %515 = vrot.lane.b32.xlu0 %v513, 32
    %v516 = vpop.permute.xlu0 %515
    %519 = vrot.lane.b32.xlu0 %v470, 64
    %v520 = vpop.permute.xlu0 %519
    %v522 = vsel %vm99, %v516, %v520
    %v523 = vpack.c.bf16 %v522, %v522
    %v525 = vsel %vm167, %v523, 0
    %527 = vmatpush.bf16.msra.mxu0 0
    %528 = vmatpush.bf16.msra.mxu0 0
    %529 = vmatpush.bf16.msra.mxu0 0
    %530 = vmatpush.bf16.msra.mxu0 0
    %531 = vmatpush.bf16.msra.mxu0 %v162
    %532 = vmatpush.bf16.msra.mxu0 %v161
    %533 = vmatpush.bf16.msra.mxu0 %v160
    %534 = vmatpush.bf16.msra.mxu0 %v159
    %535 = vmatmul.bf16.gmra.mxu0 %v525
    %v536 = vpop.f32.mrf.mxu0
    %v537 = vadd.f32 %v79, %v536
    %v538 = vpop.f32.mrf.mxu0
    %539 = vdwg.mxu0
    %v540 = vtanh.pop %v537
    %v541 = vmul.f32 %v540, %v83
    %v542 = vadd.f32 %v541, %v85
    %v543 = vmul.f32 %v542, %v464
    %545 = vrot.lane.b32.xlu0 %v542, 64
    %v546 = vpop.permute.xlu0 %545
    %v548 = vmul.f32 %v542, %v546
    %550 = vrot.lane.b32.xlu0 %v548, 32
    %v551 = vpop.permute.xlu0 %550
    %v553 = vadd.f32 %v543, %v551
    %v554 = vtanh.pop %v553
    %556 = vrot.lane.b32.xlu0 %v554, 64
    %v557 = vpop.permute.xlu0 %556
    %v559 = vmul.f32 %v542, %v557
    %s560 = scalar_lea.vmem [#allocation2], 40
    %v561 = vld [vmem:[%s560] sm:$0xff]
    %v562 = vpack.c.bf16 %v513, %v513
    %564 = vrot.lane.b32.xlu0 %v562, 32
    %v565 = vpop.permute.xlu0 %564
    %v567 = vsel %vm99, %v565, 0
    %569 = vmatpush.bf16.msra.mxu0 0
    %570 = vmatpush.bf16.msra.mxu0 0
    %571 = vmatpush.bf16.msra.mxu0 0
    %572 = vmatpush.bf16.msra.mxu0 0
    %573 = vmatpush.bf16.msra.mxu0 0
    %574 = vmatpush.bf16.msra.mxu0 0
    %575 = vmatpush.bf16.msra.mxu0 %v96
    %576 = vmatpush.bf16.msra.mxu0 %v95
    %577 = vmatmul.bf16.gmra.mxu0 %v567
    %v578 = vpop.f32.mrf.mxu0
    %v579 = vadd.f32 0.0, %v578
    %v580 = vpop.f32.mrf.mxu0
    %581 = vdwg.mxu0
    %v582 = vadd.f32 %v561, %v579
    %v583 = vtanh.pop %v582
    %v584 = vmul.f32 %v583, %v83
    %v585 = vadd.f32 %v584, %v85
    %v586 = vmul.f32 %v585, %v507
    %588 = vrot.lane.b32.xlu0 %v585, 64
    %v589 = vpop.permute.xlu0 %588
    %v591 = vmul.f32 %v585, %v589
    %593 = vrot.lane.b32.xlu0 %v591, 32
    %v594 = vpop.permute.xlu0 %593
    %v596 = vadd.f32 %v586, %v594
    %v597 = vtanh.pop %v596
    %599 = vrot.lane.b32.xlu0 %v597, 64
    %v600 = vpop.permute.xlu0 %599
    %v602 = vmul.f32 %v585, %v600
    %604 = vrot.lane.b32.xlu0 %v602, 32
    %v605 = vpop.permute.xlu0 %604
    %608 = vrot.lane.b32.xlu0 %v559, 64
    %v609 = vpop.permute.xlu0 %608
    %v611 = vsel %vm99, %v605, %v609
    %v612 = vpack.c.bf16 %v611, %v611
    %v614 = vsel %vm167, %v612, 0
    %616 = vmatpush.bf16.msra.mxu0 0
    %617 = vmatpush.bf16.msra.mxu0 0
    %618 = vmatpush.bf16.msra.mxu0 0
    %619 = vmatpush.bf16.msra.mxu0 0
    %620 = vmatpush.bf16.msra.mxu0 %v162
    %621 = vmatpush.bf16.msra.mxu0 %v161
    %622 = vmatpush.bf16.msra.mxu0 %v160
    %623 = vmatpush.bf16.msra.mxu0 %v159
    %624 = vmatmul.bf16.gmra.mxu0 %v614
    %v625 = vpop.f32.mrf.mxu0
    %v626 = vadd.f32 %v79, %v625
    %v627 = vpop.f32.mrf.mxu0
    %628 = vdwg.mxu0
    %v629 = vtanh.pop %v626
    %v630 = vmul.f32 %v629, %v83
    %v631 = vadd.f32 %v630, %v85
    %v632 = vmul.f32 %v631, %v553
    %634 = vrot.lane.b32.xlu0 %v631, 64
    %v635 = vpop.permute.xlu0 %634
    %v637 = vmul.f32 %v631, %v635
    %639 = vrot.lane.b32.xlu0 %v637, 32
    %v640 = vpop.permute.xlu0 %639
    %v642 = vadd.f32 %v632, %v640
    %v643 = vtanh.pop %v642
    %645 = vrot.lane.b32.xlu0 %v643, 64
    %v646 = vpop.permute.xlu0 %645
    %v648 = vmul.f32 %v631, %v646
    %s649 = scalar_lea.vmem [#allocation2], 48
    %v650 = vld [vmem:[%s649] sm:$0xff]
    %v651 = vpack.c.bf16 %v602, %v602
    %653 = vrot.lane.b32.xlu0 %v651, 32
    %v654 = vpop.permute.xlu0 %653
    %v656 = vsel %vm99, %v654, 0
    %658 = vmatpush.bf16.msra.mxu0 0
    %659 = vmatpush.bf16.msra.mxu0 0
    %660 = vmatpush.bf16.msra.mxu0 0
    %661 = vmatpush.bf16.msra.mxu0 0
    %662 = vmatpush.bf16.msra.mxu0 0
    %663 = vmatpush.bf16.msra.mxu0 0
    %664 = vmatpush.bf16.msra.mxu0 %v96
    %665 = vmatpush.bf16.msra.mxu0 %v95
    %666 = vmatmul.bf16.gmra.mxu0 %v656
    %v667 = vpop.f32.mrf.mxu0
    %v668 = vadd.f32 0.0, %v667
    %v669 = vpop.f32.mrf.mxu0
    %670 = vdwg.mxu0
    %v671 = vadd.f32 %v650, %v668
    %v672 = vtanh.pop %v671
    %v673 = vmul.f32 %v672, %v83
    %v674 = vadd.f32 %v673, %v85
    %v675 = vmul.f32 %v674, %v596
    %677 = vrot.lane.b32.xlu0 %v674, 64
    %v678 = vpop.permute.xlu0 %677
    %v680 = vmul.f32 %v674, %v678
    %682 = vrot.lane.b32.xlu0 %v680, 32
    %v683 = vpop.permute.xlu0 %682
    %v685 = vadd.f32 %v675, %v683
    %v686 = vtanh.pop %v685
    %688 = vrot.lane.b32.xlu0 %v686, 64
    %v689 = vpop.permute.xlu0 %688
    %v691 = vmul.f32 %v674, %v689
    %693 = vrot.lane.b32.xlu0 %v691, 32
    %v694 = vpop.permute.xlu0 %693
    %697 = vrot.lane.b32.xlu0 %v648, 64
    %v698 = vpop.permute.xlu0 %697
    %v700 = vsel %vm99, %v694, %v698
    %v701 = vpack.c.bf16 %v700, %v700
    %v703 = vsel %vm167, %v701, 0
    %705 = vmatpush.bf16.msra.mxu0 0
    %706 = vmatpush.bf16.msra.mxu0 0
    %707 = vmatpush.bf16.msra.mxu0 0
    %708 = vmatpush.bf16.msra.mxu0 0
    %709 = vmatpush.bf16.msra.mxu0 %v162
    %710 = vmatpush.bf16.msra.mxu0 %v161
    %711 = vmatpush.bf16.msra.mxu0 %v160
    %712 = vmatpush.bf16.msra.mxu0 %v159
    %713 = vmatmul.bf16.gmra.mxu0 %v703
    %v714 = vpop.f32.mrf.mxu0
    %v715 = vadd.f32 %v79, %v714
    %v716 = vpop.f32.mrf.mxu0
    %717 = vdwg.mxu0
    %v718 = vtanh.pop %v715
    %v719 = vmul.f32 %v718, %v83
    %v720 = vadd.f32 %v719, %v85
    %v721 = vmul.f32 %v720, %v642
    %723 = vrot.lane.b32.xlu0 %v720, 64
    %v724 = vpop.permute.xlu0 %723
    %v726 = vmul.f32 %v720, %v724
    %728 = vrot.lane.b32.xlu0 %v726, 32
    %v729 = vpop.permute.xlu0 %728
    %v731 = vadd.f32 %v721, %v729
    %v732 = vtanh.pop %v731
    %734 = vrot.lane.b32.xlu0 %v732, 64
    %v735 = vpop.permute.xlu0 %734
    %v737 = vmul.f32 %v720, %v735
    %s738 = scalar_lea.vmem [#allocation2], 56
    %v739 = vld [vmem:[%s738] sm:$0xff]
    %v740 = vpack.c.bf16 %v691, %v691
    %742 = vrot.lane.b32.xlu0 %v740, 32
    %v743 = vpop.permute.xlu0 %742
    %v745 = vsel %vm99, %v743, 0
    %747 = vmatpush.bf16.msra.mxu0 0
    %748 = vmatpush.bf16.msra.mxu0 0
    %749 = vmatpush.bf16.msra.mxu0 0
    %750 = vmatpush.bf16.msra.mxu0 0
    %751 = vmatpush.bf16.msra.mxu0 0
    %752 = vmatpush.bf16.msra.mxu0 0
    %753 = vmatpush.bf16.msra.mxu0 %v96
    %754 = vmatpush.bf16.msra.mxu0 %v95
    %755 = vmatmul.bf16.gmra.mxu0 %v745
    %v756 = vpop.f32.mrf.mxu0
    %v757 = vadd.f32 0.0, %v756
    %v758 = vpop.f32.mrf.mxu0
    %759 = vdwg.mxu0
    %v760 = vadd.f32 %v739, %v757
    %v761 = vtanh.pop %v760
    %v762 = vmul.f32 %v761, %v83
    %v763 = vadd.f32 %v762, %v85
    %v764 = vmul.f32 %v763, %v685
    %766 = vrot.lane.b32.xlu0 %v763, 64
    %v767 = vpop.permute.xlu0 %766
    %v769 = vmul.f32 %v763, %v767
    %771 = vrot.lane.b32.xlu0 %v769, 32
    %v772 = vpop.permute.xlu0 %771
    %v774 = vadd.f32 %v764, %v772
    %v775 = vtanh.pop %v774
    %777 = vrot.lane.b32.xlu0 %v775, 64
    %v778 = vpop.permute.xlu0 %777
    %v780 = vmul.f32 %v763, %v778
    %782 = vrot.lane.b32.xlu0 %v780, 32
    %v783 = vpop.permute.xlu0 %782
    %786 = vrot.lane.b32.xlu0 %v737, 64
    %v787 = vpop.permute.xlu0 %786
    %v789 = vsel %vm99, %v783, %v787
    %v790 = vpack.c.bf16 %v789, %v789
    %v792 = vsel %vm167, %v790, 0
    %794 = vmatpush.bf16.msra.mxu0 0
    %795 = vmatpush.bf16.msra.mxu0 0
    %796 = vmatpush.bf16.msra.mxu0 0
    %797 = vmatpush.bf16.msra.mxu0 0
    %798 = vmatpush.bf16.msra.mxu0 %v162
    %799 = vmatpush.bf16.msra.mxu0 %v161
    %800 = vmatpush.bf16.msra.mxu0 %v160
    %801 = vmatpush.bf16.msra.mxu0 %v159
    %802 = vmatmul.bf16.gmra.mxu0 %v792
    %v803 = vpop.f32.mrf.mxu0
    %v804 = vadd.f32 %v79, %v803
    %v805 = vpop.f32.mrf.mxu0
    %806 = vdwg.mxu0
    %v807 = vtanh.pop %v804
    %v808 = vmul.f32 %v807, %v83
    %v809 = vadd.f32 %v808, %v85
    %v810 = vmul.f32 %v809, %v731
    %812 = vrot.lane.b32.xlu0 %v809, 64
    %v813 = vpop.permute.xlu0 %812
    %v815 = vmul.f32 %v809, %v813
    %817 = vrot.lane.b32.xlu0 %v815, 32
    %v818 = vpop.permute.xlu0 %817
    %v820 = vadd.f32 %v810, %v818
    %v821 = vtanh.pop %v820
    %823 = vrot.lane.b32.xlu0 %v821, 64
    %v824 = vpop.permute.xlu0 %823
    %v826 = vmul.f32 %v809, %v824
    %v827 = vmax.f32 %v826, 0.0
    %v828 = vpack.c.bf16 %v827, %v827
    %830 = vrot.lane.b32.xlu0 %v828, 32
    %v831 = vpop.permute.xlu0 %830
    %v836 = vunpack.c.l.b16 %v75
    %v837 = vunpack.c.l.b16 %v76
    %v838 = vunpack.c.l.b16 %v77
    %v839 = vunpack.c.l.b16 %v78
    %v840 = vpack.c.b16 %v837, %v836
    %v841 = vpack.c.b16 %v839, %v838
    %v845 = vsel %vm99, %v831, 0
    %847 = vmatpush.bf16.msra.mxu0 0
    %848 = vmatpush.bf16.msra.mxu0 0
    %849 = vmatpush.bf16.msra.mxu0 0
    %850 = vmatpush.bf16.msra.mxu0 0
    %851 = vmatpush.bf16.msra.mxu0 0
    %852 = vmatpush.bf16.msra.mxu0 0
    %853 = vmatpush.bf16.msra.mxu0 %v841
    %854 = vmatpush.bf16.msra.mxu0 %v840
    %855 = vmatmul.bf16.gmra.mxu0 %v845
    %v856 = vpop.f32.mrf.mxu0
    %v857 = vadd.f32 %v81, %v856
    %v858 = vpop.f32.mrf.mxu0
    %859 = vdwg.mxu0
    %860 = vst [vmem:[#allocation8] sm:$0xff] %v857
    %s861 = scalar_lea.vmem [#allocation2], 64
    %v862 = vld [vmem:[%s861] sm:$0xff]
    %v863 = vpack.c.bf16 %v780, %v780
    %865 = vrot.lane.b32.xlu0 %v863, 32
    %v866 = vpop.permute.xlu0 %865
    %v868 = vsel %vm99, %v866, 0
    %870 = vmatpush.bf16.msra.mxu0 0
    %871 = vmatpush.bf16.msra.mxu0 0
    %872 = vmatpush.bf16.msra.mxu0 0
    %873 = vmatpush.bf16.msra.mxu0 0
    %874 = vmatpush.bf16.msra.mxu0 0
    %875 = vmatpush.bf16.msra.mxu0 0
    %876 = vmatpush.bf16.msra.mxu0 %v96
    %877 = vmatpush.bf16.msra.mxu0 %v95
    %878 = vmatmul.bf16.gmra.mxu0 %v868
    %v879 = vpop.f32.mrf.mxu0
    %v880 = vadd.f32 0.0, %v879
    %v881 = vpop.f32.mrf.mxu0
    %882 = vdwg.mxu0
    %v883 = vadd.f32 %v862, %v880
    %v884 = vtanh.pop %v883
    %v885 = vmul.f32 %v884, %v83
    %v886 = vadd.f32 %v885, %v85
    %v887 = vmul.f32 %v886, %v774
    %889 = vrot.lane.b32.xlu0 %v886, 64
    %v890 = vpop.permute.xlu0 %889
    %v892 = vmul.f32 %v886, %v890
    %894 = vrot.lane.b32.xlu0 %v892, 32
    %v895 = vpop.permute.xlu0 %894
    %v897 = vadd.f32 %v887, %v895
    %v898 = vtanh.pop %v897
    %900 = vrot.lane.b32.xlu0 %v898, 64
    %v901 = vpop.permute.xlu0 %900
    %v903 = vmul.f32 %v886, %v901
    %905 = vrot.lane.b32.xlu0 %v903, 32
    %v906 = vpop.permute.xlu0 %905
    %909 = vrot.lane.b32.xlu0 %v826, 64
    %v910 = vpop.permute.xlu0 %909
    %v912 = vsel %vm99, %v906, %v910
    %v913 = vpack.c.bf16 %v912, %v912
    %v915 = vsel %vm167, %v913, 0
    %917 = vmatpush.bf16.msra.mxu0 0
    %918 = vmatpush.bf16.msra.mxu0 0
    %919 = vmatpush.bf16.msra.mxu0 0
    %920 = vmatpush.bf16.msra.mxu0 0
    %921 = vmatpush.bf16.msra.mxu0 %v162
    %922 = vmatpush.bf16.msra.mxu0 %v161
    %923 = vmatpush.bf16.msra.mxu0 %v160
    %924 = vmatpush.bf16.msra.mxu0 %v159
    %925 = vmatmul.bf16.gmra.mxu0 %v915
    %v926 = vpop.f32.mrf.mxu0
    %v927 = vadd.f32 %v79, %v926
    %v928 = vpop.f32.mrf.mxu0
    %929 = vdwg.mxu0
    %v930 = vtanh.pop %v927
    %v931 = vmul.f32 %v930, %v83
    %v932 = vadd.f32 %v931, %v85
    %v933 = vmul.f32 %v932, %v820
    %935 = vrot.lane.b32.xlu0 %v932, 64
    %v936 = vpop.permute.xlu0 %935
    %v938 = vmul.f32 %v932, %v936
    %940 = vrot.lane.b32.xlu0 %v938, 32
    %v941 = vpop.permute.xlu0 %940
    %v943 = vadd.f32 %v933, %v941
    %v944 = vtanh.pop %v943
    %946 = vrot.lane.b32.xlu0 %v944, 64
    %v947 = vpop.permute.xlu0 %946
    %v949 = vmul.f32 %v932, %v947
    %v950 = vmax.f32 %v949, 0.0
    %v951 = vpack.c.bf16 %v950, %v950
    %953 = vrot.lane.b32.xlu0 %v951, 32
    %v954 = vpop.permute.xlu0 %953
    %v956 = vsel %vm99, %v954, 0
    %958 = vmatpush.bf16.msra.mxu0 0
    %959 = vmatpush.bf16.msra.mxu0 0
    %960 = vmatpush.bf16.msra.mxu0 0
    %961 = vmatpush.bf16.msra.mxu0 0
    %962 = vmatpush.bf16.msra.mxu0 0
    %963 = vmatpush.bf16.msra.mxu0 0
    %964 = vmatpush.bf16.msra.mxu0 %v841
    %965 = vmatpush.bf16.msra.mxu0 %v840
    %966 = vmatmul.bf16.gmra.mxu0 %v956
    %v967 = vpop.f32.mrf.mxu0
    %v968 = vadd.f32 %v81, %v967
    %v969 = vpop.f32.mrf.mxu0
    %970 = vdwg.mxu0
    %s971 = scalar_lea.vmem [#allocation8], 8
    %972 = vst [vmem:[%s971] sm:$0xff] %v968
    %s973 = scalar_lea.vmem [#allocation2], 72
    %v974 = vld [vmem:[%s973] sm:$0xff]
    %v975 = vpack.c.bf16 %v903, %v903
    %977 = vrot.lane.b32.xlu0 %v975, 32
    %v978 = vpop.permute.xlu0 %977
    %v980 = vsel %vm99, %v978, 0
    %982 = vmatpush.bf16.msra.mxu0 0
    %983 = vmatpush.bf16.msra.mxu0 0
    %984 = vmatpush.bf16.msra.mxu0 0
    %985 = vmatpush.bf16.msra.mxu0 0
    %986 = vmatpush.bf16.msra.mxu0 0
    %987 = vmatpush.bf16.msra.mxu0 0
    %988 = vmatpush.bf16.msra.mxu0 %v96
    %989 = vmatpush.bf16.msra.mxu0 %v95
    %990 = vmatmul.bf16.gmra.mxu0 %v980
    %v991 = vpop.f32.mrf.mxu0
    %v992 = vadd.f32 0.0, %v991
    %v993 = vpop.f32.mrf.mxu0
    %994 = vdwg.mxu0
    %v995 = vadd.f32 %v974, %v992
    %v996 = vtanh.pop %v995
    %v997 = vmul.f32 %v996, %v83
    %v998 = vadd.f32 %v997, %v85
    %v999 = vmul.f32 %v998, %v897
    %1001 = vrot.lane.b32.xlu0 %v998, 64
    %v1002 = vpop.permute.xlu0 %1001
    %v1004 = vmul.f32 %v998, %v1002
    %1006 = vrot.lane.b32.xlu0 %v1004, 32
    %v1007 = vpop.permute.xlu0 %1006
    %v1009 = vadd.f32 %v999, %v1007
    %v1010 = vtanh.pop %v1009
    %1012 = vrot.lane.b32.xlu0 %v1010, 64
    %v1013 = vpop.permute.xlu0 %1012
    %v1015 = vmul.f32 %v998, %v1013
    %1017 = vrot.lane.b32.xlu0 %v1015, 32
    %v1018 = vpop.permute.xlu0 %1017
    %1021 = vrot.lane.b32.xlu0 %v949, 64
    %v1022 = vpop.permute.xlu0 %1021
    %v1024 = vsel %vm99, %v1018, %v1022
    %v1025 = vpack.c.bf16 %v1024, %v1024
    %v1027 = vsel %vm167, %v1025, 0
    %1029 = vmatpush.bf16.msra.mxu0 0
    %1030 = vmatpush.bf16.msra.mxu0 0
    %1031 = vmatpush.bf16.msra.mxu0 0
    %1032 = vmatpush.bf16.msra.mxu0 0
    %1033 = vmatpush.bf16.msra.mxu0 %v162
    %1034 = vmatpush.bf16.msra.mxu0 %v161
    %1035 = vmatpush.bf16.msra.mxu0 %v160
    %1036 = vmatpush.bf16.msra.mxu0 %v159
    %1037 = vmatmul.bf16.gmra.mxu0 %v1027
    %v1038 = vpop.f32.mrf.mxu0
    %v1039 = vadd.f32 %v79, %v1038
    %v1040 = vpop.f32.mrf.mxu0
    %1041 = vdwg.mxu0
    %v1042 = vtanh.pop %v1039
    %v1043 = vmul.f32 %v1042, %v83
    %v1044 = vadd.f32 %v1043, %v85
    %v1045 = vmul.f32 %v1044, %v943
    %1047 = vrot.lane.b32.xlu0 %v1044, 64
    %v1048 = vpop.permute.xlu0 %1047
    %v1050 = vmul.f32 %v1044, %v1048
    %1052 = vrot.lane.b32.xlu0 %v1050, 32
    %v1053 = vpop.permute.xlu0 %1052
    %v1055 = vadd.f32 %v1045, %v1053
    %v1056 = vtanh.pop %v1055
    %1058 = vrot.lane.b32.xlu0 %v1056, 64
    %v1059 = vpop.permute.xlu0 %1058
    %v1061 = vmul.f32 %v1044, %v1059
    %v1062 = vmax.f32 %v1061, 0.0
    %v1063 = vpack.c.bf16 %v1062, %v1062
    %1065 = vrot.lane.b32.xlu0 %v1063, 32
    %v1066 = vpop.permute.xlu0 %1065
    %v1068 = vsel %vm99, %v1066, 0
    %1070 = vmatpush.bf16.msra.mxu0 0
    %1071 = vmatpush.bf16.msra.mxu0 0
    %1072 = vmatpush.bf16.msra.mxu0 0
    %1073 = vmatpush.bf16.msra.mxu0 0
    %1074 = vmatpush.bf16.msra.mxu0 0
    %1075 = vmatpush.bf16.msra.mxu0 0
    %1076 = vmatpush.bf16.msra.mxu0 %v841
    %1077 = vmatpush.bf16.msra.mxu0 %v840
    %1078 = vmatmul.bf16.gmra.mxu0 %v1068
    %v1079 = vpop.f32.mrf.mxu0
    %v1080 = vadd.f32 %v81, %v1079
    %v1081 = vpop.f32.mrf.mxu0
    %1082 = vdwg.mxu0
    %s1083 = scalar_lea.vmem [#allocation8], 16
    %1084 = vst [vmem:[%s1083] sm:$0xff] %v1080
    %s1085 = scalar_lea.vmem [#allocation2], 80
    %v1086 = vld [vmem:[%s1085] sm:$0xff]
    %v1087 = vpack.c.bf16 %v1015, %v1015
    %1089 = vrot.lane.b32.xlu0 %v1087, 32
    %v1090 = vpop.permute.xlu0 %1089
    %v1092 = vsel %vm99, %v1090, 0
    %1094 = vmatpush.bf16.msra.mxu0 0
    %1095 = vmatpush.bf16.msra.mxu0 0
    %1096 = vmatpush.bf16.msra.mxu0 0
    %1097 = vmatpush.bf16.msra.mxu0 0
    %1098 = vmatpush.bf16.msra.mxu0 0
    %1099 = vmatpush.bf16.msra.mxu0 0
    %1100 = vmatpush.bf16.msra.mxu0 %v96
    %1101 = vmatpush.bf16.msra.mxu0 %v95
    %1102 = vmatmul.bf16.gmra.mxu0 %v1092
    %v1103 = vpop.f32.mrf.mxu0
    %v1104 = vadd.f32 0.0, %v1103
    %v1105 = vpop.f32.mrf.mxu0
    %1106 = vdwg.mxu0
    %v1107 = vadd.f32 %v1086, %v1104
    %v1108 = vtanh.pop %v1107
    %v1109 = vmul.f32 %v1108, %v83
    %v1110 = vadd.f32 %v1109, %v85
    %v1111 = vmul.f32 %v1110, %v1009
    %1113 = vrot.lane.b32.xlu0 %v1110, 64
    %v1114 = vpop.permute.xlu0 %1113
    %v1116 = vmul.f32 %v1110, %v1114
    %1118 = vrot.lane.b32.xlu0 %v1116, 32
    %v1119 = vpop.permute.xlu0 %1118
    %v1121 = vadd.f32 %v1111, %v1119
    %v1122 = vtanh.pop %v1121
    %1124 = vrot.lane.b32.xlu0 %v1122, 64
    %v1125 = vpop.permute.xlu0 %1124
    %v1127 = vmul.f32 %v1110, %v1125
    %1129 = vrot.lane.b32.xlu0 %v1127, 32
    %v1130 = vpop.permute.xlu0 %1129
    %1133 = vrot.lane.b32.xlu0 %v1061, 64
    %v1134 = vpop.permute.xlu0 %1133
    %v1136 = vsel %vm99, %v1130, %v1134
    %v1137 = vpack.c.bf16 %v1136, %v1136
    %v1139 = vsel %vm167, %v1137, 0
    %1141 = vmatpush.bf16.msra.mxu0 0
    %1142 = vmatpush.bf16.msra.mxu0 0
    %1143 = vmatpush.bf16.msra.mxu0 0
    %1144 = vmatpush.bf16.msra.mxu0 0
    %1145 = vmatpush.bf16.msra.mxu0 %v162
    %1146 = vmatpush.bf16.msra.mxu0 %v161
    %1147 = vmatpush.bf16.msra.mxu0 %v160
    %1148 = vmatpush.bf16.msra.mxu0 %v159
    %1149 = vmatmul.bf16.gmra.mxu0 %v1139
    %v1150 = vpop.f32.mrf.mxu0
    %v1151 = vadd.f32 %v79, %v1150
    %v1152 = vpop.f32.mrf.mxu0
    %1153 = vdwg.mxu0
    %v1154 = vtanh.pop %v1151
    %v1155 = vmul.f32 %v1154, %v83
    %v1156 = vadd.f32 %v1155, %v85
    %v1157 = vmul.f32 %v1156, %v1055
    %1159 = vrot.lane.b32.xlu0 %v1156, 64
    %v1160 = vpop.permute.xlu0 %1159
    %v1162 = vmul.f32 %v1156, %v1160
    %1164 = vrot.lane.b32.xlu0 %v1162, 32
    %v1165 = vpop.permute.xlu0 %1164
    %v1167 = vadd.f32 %v1157, %v1165
    %v1168 = vtanh.pop %v1167
    %1170 = vrot.lane.b32.xlu0 %v1168, 64
    %v1171 = vpop.permute.xlu0 %1170
    %v1173 = vmul.f32 %v1156, %v1171
    %v1174 = vmax.f32 %v1173, 0.0
    %v1175 = vpack.c.bf16 %v1174, %v1174
    %1177 = vrot.lane.b32.xlu0 %v1175, 32
    %v1178 = vpop.permute.xlu0 %1177
    %v1180 = vsel %vm99, %v1178, 0
    %1182 = vmatpush.bf16.msra.mxu0 0
    %1183 = vmatpush.bf16.msra.mxu0 0
    %1184 = vmatpush.bf16.msra.mxu0 0
    %1185 = vmatpush.bf16.msra.mxu0 0
    %1186 = vmatpush.bf16.msra.mxu0 0
    %1187 = vmatpush.bf16.msra.mxu0 0
    %1188 = vmatpush.bf16.msra.mxu0 %v841
    %1189 = vmatpush.bf16.msra.mxu0 %v840
    %1190 = vmatmul.bf16.gmra.mxu0 %v1180
    %v1191 = vpop.f32.mrf.mxu0
    %v1192 = vadd.f32 %v81, %v1191
    %v1193 = vpop.f32.mrf.mxu0
    %1194 = vdwg.mxu0
    %s1195 = scalar_lea.vmem [#allocation8], 24
    %1196 = vst [vmem:[%s1195] sm:$0xff] %v1192
    // Predicated region
    $region26: #{tpu_custom_call.1} parent=1 // pred_check
      _
    $region27: #{tpu_custom_call.1} parent=1 // pred_check_branch
      %1198 = sbr.rel (0) target = $region29
    $region28: #{tpu_custom_call.1} parent=1 // pred_region
      %1200 = vsyncadd [#allocation4], 0
      %s1201 = sshll.u32 [#allocation8], 4
      %s1202 = int_to_ptr.vmem [resolvable:$true] %s1201
      %s1203 = sshll.u32 %s3, 4
      %s1204 = int_to_ptr.hbm [resolvable:$true] %s1203
      %1209 = dma.vmem_to_hbm [thread:$0]  %s1202, 512, %s1204, [#allocation4], 128, 128, 8
    $region29: #{tpu_custom_call.1} parent=1 // pred_fallthru
      _
    // Predicated region
    $region30: #{tpu_custom_call.1} parent=1 // pred_check
      _
    $region31: #{tpu_custom_call.1} parent=1 // pred_check_branch
      %1211 = sbr.rel (0) target = $region33
    $region32: #{tpu_custom_call.1} parent=1 // pred_region
      %1213 = dma.done [#allocation4], 512
    $region33: #{tpu_custom_call.1} parent=1 // pred_fallthru
      _
    %1214 = vsyncpa [#allocation3], 1
    %1215 = vsyncpa [#allocation6], 1
    %1216 = vsyncpa [#allocation4], 1

</llo_original>
